<compile_context>
chip_gen: v6e
topology: v6e:2x2x1
jax: 0.10.0
libtpu: 0.0.40
codegen_flags: <defaults>
</compile_context>

<pallas_src>
import functools

import jax
import jax.numpy as jnp
from jax.experimental import pallas as pl
from jax.experimental.pallas import tpu as pltpu

N_CLASSES = 4
KERNEL_SIZE = 3
STRIDE = 2
BN_EPS = 1e-5
LRELU_SLOPE = 0.2
C_PAD = 128          # lane-dense channel padding used for every layer


def _round_up(x, m):
    return (x + m - 1) // m * m


def _conv_out_len(l):
    return (l - KERNEL_SIZE) // STRIDE + 1


# ---------------------------------------------------------------------------
# Fused Pallas kernel (all 4 layers)
# ---------------------------------------------------------------------------
def _make_kernel(n_batch, lens, pads):
    """lens = (L0, L1, L2, L3, L4) true lengths; pads = per-batch row strides."""
    _, l1, l2, l3, l4 = lens
    p0, p1, p2, p3 = pads

    def gather(src_ref, base, l_out):
        # In-kernel im2col via strided reads: rows {base+t, base+t+2, ...}.
        taps = [src_ref[pl.ds(base + t, l_out, stride=STRIDE), :]
                for t in range(KERNEL_SIZE)]
        return jnp.concatenate(taps, axis=1)          # (l_out, 3*C_PAD)

    def kernel(x_ref, w1_ref, w2_ref, w3_ref, w4_ref,
               g1_ref, bt1_ref, g2_ref, bt2_ref, g3_ref, bt3_ref, b4_ref,
               o_ref, a1_ref, a2_ref, a3_ref):

        def conv_bn_lrelu(src_ref, src_stride, l_out, w_ref, g_ref, bt_ref,
                          dst_ref, dst_stride):
            # Conv (bias omitted: exactly cancelled by the BN mean subtraction).
            ys = []
            total = None
            for b in range(n_batch):
                lhs = gather(src_ref, b * src_stride, l_out)
                y = jnp.dot(lhs, w_ref[...], preferred_element_type=jnp.float32)
                ys.append(y)
                s = jnp.sum(y, axis=0, keepdims=True)
                total = s if total is None else total + s
            inv_cnt = 1.0 / float(n_batch * l_out)
            mean = total * inv_cnt                     # stats over real N*L rows only

            # Center once, reuse for variance and for the normalization.
            cs = [y - mean for y in ys]
            ssq = None
            for c in cs:
                v = jnp.sum(c * c, axis=0, keepdims=True)
                ssq = v if ssq is None else ssq + v
            var = ssq * inv_cnt                        # biased var (training-mode BN)
            scale = g_ref[...] * jax.lax.rsqrt(var + BN_EPS)
            shift = bt_ref[...]

            for b in range(n_batch):
                z = cs[b] * scale + shift              # normalize + affine = 1 FMA
                z = jnp.where(z >= 0, z, LRELU_SLOPE * z)   # LeakyReLU(0.2)
                dst_ref[pl.ds(b * dst_stride, l_out), :] = z

        conv_bn_lrelu(x_ref,  p0, l1, w1_ref, g1_ref, bt1_ref, a1_ref, p1)
        conv_bn_lrelu(a1_ref, p1, l2, w2_ref, g2_ref, bt2_ref, a2_ref, p2)
        conv_bn_lrelu(a2_ref, p2, l3, w3_ref, g3_ref, bt3_ref, a3_ref, p3)

        # Final block: conv + bias only (no BN, no activation).
        for b in range(n_batch):
            lhs = gather(a3_ref, b * p3, l4)
            y = jnp.dot(lhs, w4_ref[...], preferred_element_type=jnp.float32)
            o_ref[b] = y + b4_ref[...]

    return kernel


# ---------------------------------------------------------------------------
# Parameters: PyTorch-style init + one-time packing into kernel layout
# ---------------------------------------------------------------------------
def init_classifier_params(key, im_chan, n_classes=N_CLASSES, hidden_dim=32):
    dims = [
        (im_chan, hidden_dim, False),
        (hidden_dim, hidden_dim * 2, False),
        (hidden_dim * 2, hidden_dim * 4, False),
        (hidden_dim * 4, n_classes, True),
    ]
    params = []
    for (c_in, c_out, final) in dims:
        key, kw, kb = jax.random.split(key, 3)
        fan_in = c_in * KERNEL_SIZE
        bound = 1.0 / (fan_in ** 0.5)
        p = {
            "w": jax.random.uniform(kw, (c_out, c_in, KERNEL_SIZE), jnp.float32,
                                    -bound, bound),
            "b": jax.random.uniform(kb, (c_out,), jnp.float32, -bound, bound),
        }
        if not final:
            p["gamma"] = jnp.ones((c_out,), jnp.float32)   # BatchNorm1d defaults
            p["beta"] = jnp.zeros((c_out,), jnp.float32)
        params.append(p)
    return params


def pack_params(params):
    """Hoisted out of the forward path: lay out weights as (3*C_PAD, C_PAD)."""
    packed = {}
    for i, p in enumerate(params, start=1):
        c_out, c_in, k = p["w"].shape
        assert c_in <= C_PAD and c_out <= C_PAD
        wt = jnp.transpose(p["w"], (2, 1, 0))                        # (K, C_in, C_out)
        w2d = jnp.zeros((k, C_PAD, C_PAD), jnp.float32).at[:, :c_in, :c_out].set(wt)
        packed[f"w{i}"] = w2d.reshape(k * C_PAD, C_PAD)              # row = t*C_PAD + ci
        if "gamma" in p:
            packed[f"g{i}"] = jnp.zeros((1, C_PAD), jnp.float32).at[0, :c_out].set(p["gamma"])
            packed[f"bt{i}"] = jnp.zeros((1, C_PAD), jnp.float32).at[0, :c_out].set(p["beta"])
        else:
            packed[f"b{i}"] = jnp.zeros((1, C_PAD), jnp.float32).at[0, :c_out].set(p["b"])
    return packed


# ---------------------------------------------------------------------------
# Forward
# ---------------------------------------------------------------------------
@functools.partial(jax.jit, static_argnames=("n_classes",))
def classifier_forward(packed, image, n_classes=N_CLASSES):
    """image: (N, im_chan, L) f32 -> (N, n_classes * L_final), matching .view(N, -1)."""
    n, c_in, l0 = image.shape
    assert c_in <= C_PAD
    l1 = _conv_out_len(l0)
    l2 = _conv_out_len(l1)
    l3 = _conv_out_len(l2)
    l4 = _conv_out_len(l3)
    p0, p1, p2, p3 = (_round_up(l, 8) for l in (l0, l1, l2, l3))

    # Channels-last, lane-padded, sublane-padded, flattened to a 2-D VMEM slab.
    x = jnp.transpose(image, (0, 2, 1))                              # (N, L0, C_in)
    x = jnp.pad(x, ((0, 0), (0, p0 - l0), (0, C_PAD - c_in)))
    x = x.reshape(n * p0, C_PAD)

    kernel = _make_kernel(n, (l0, l1, l2, l3, l4), (p0, p1, p2, p3))
    vmem = pl.BlockSpec(memory_space=pltpu.MemorySpace.VMEM)

    out = pl.pallas_call(
        kernel,
        out_shape=jax.ShapeDtypeStruct((n, l4, C_PAD), jnp.float32),  # lane-dense output
        in_specs=[vmem] * 12,
        out_specs=vmem,
        scratch_shapes=[
            pltpu.VMEM((n * p1, C_PAD), jnp.float32),
            pltpu.VMEM((n * p2, C_PAD), jnp.float32),
            pltpu.VMEM((n * p3, C_PAD), jnp.float32),
        ],
        compiler_params=pltpu.CompilerParams(vmem_limit_bytes=32 * 1024 * 1024),
    )(x, packed["w1"], packed["w2"], packed["w3"], packed["w4"],
      packed["g1"], packed["bt1"], packed["g2"], packed["bt2"],
      packed["g3"], packed["bt3"], packed["b4"])

    # class_pred.view(N, -1) on NCL layout: one tiny C-major reorder at the end.
    y = jnp.transpose(out[:, :, :n_classes], (0, 2, 1))               # (N, n_classes, L4)
    return y.reshape(n, -1)


# ---------------------------------------------------------------------------
# Pure-JAX reference (for correctness check only)
# ---------------------------------------------------------------------------
def _reference_forward(params, image):
    x = image
    for p in params:
        y = jax.lax.conv_general_dilated(
            x, p["w"], window_strides=(STRIDE,), padding="VALID",
            dimension_numbers=("NCH", "OIH", "NCH"))
        y = y + p["b"][None, :, None]
        if "gamma" in p:
            mean = jnp.mean(y, axis=(0, 2), keepdims=True)
            var = jnp.mean((y - mean) ** 2, axis=(0, 2), keepdims=True)
            y = (y - mean) * jax.lax.rsqrt(var + BN_EPS)
            y = y * p["gamma"][None, :, None] + p["beta"][None, :, None]
            y = jnp.where(y >= 0, y, LRELU_SLOPE * y)
        x = y
    return x.reshape(x.shape[0], -1)


# ---------------------------------------------------------------------------
# Main
# ---------------------------------------------------------------------------
if __name__ == "__main__":
    key = jax.random.PRNGKey(0)
    k_params, k_x = jax.random.split(key)

    IM_CHAN = 4
    SEQ_LEN = 64          # 64 -> 31 -> 15 -> 7 -> 3 after four (k=3, s=2) convs
    BATCH = 2

    params = init_classifier_params(k_params, IM_CHAN)
    packed = pack_params(params)
    x = jax.random.normal(k_x, (BATCH, IM_CHAN, SEQ_LEN), jnp.float32)

    out = classifier_forward(packed, x)
    out = jax.block_until_ready(out)

    assert out.shape == (BATCH, N_CLASSES * 3), out.shape
    assert bool(jnp.all(jnp.isfinite(out)))

    ref = _reference_forward(params, x)
    assert jnp.allclose(out, ref, rtol=2e-2, atol=2e-2), \
        float(jnp.max(jnp.abs(out - ref)))

    print("KERNEL_OK")
</pallas_src>

<mosaic_0001>
module attributes {stable_mosaic.version = 11 : i64} {
  func.func @kernel(%arg0: memref<128x128xf32, #tpu.memory_space<vmem>>, %arg1: memref<384x128xf32, #tpu.memory_space<vmem>>, %arg2: memref<384x128xf32, #tpu.memory_space<vmem>>, %arg3: memref<384x128xf32, #tpu.memory_space<vmem>>, %arg4: memref<384x128xf32, #tpu.memory_space<vmem>>, %arg5: memref<1x128xf32, #tpu.memory_space<vmem>>, %arg6: memref<1x128xf32, #tpu.memory_space<vmem>>, %arg7: memref<1x128xf32, #tpu.memory_space<vmem>>, %arg8: memref<1x128xf32, #tpu.memory_space<vmem>>, %arg9: memref<1x128xf32, #tpu.memory_space<vmem>>, %arg10: memref<1x128xf32, #tpu.memory_space<vmem>>, %arg11: memref<1x128xf32, #tpu.memory_space<vmem>>, %arg12: memref<2x3x128xf32, #tpu.memory_space<vmem>>, %arg13: memref<64x128xf32, #tpu.memory_space<vmem>>, %arg14: memref<32x128xf32, #tpu.memory_space<vmem>>, %arg15: memref<16x128xf32, #tpu.memory_space<vmem>>) attributes {dimension_semantics = [], scalar_prefetch = 0 : i64, scratch_operands = 3 : i64, tpu.core_type = #tpu.core_type<tc>} {
    %c0 = arith.constant 0 : index
    %c0_0 = arith.constant 0 : index
    %0 = tpu.strided_load %arg0[%c0, %c0_0] {strides = array<i32: 2, 1>} : memref<128x128xf32, #tpu.memory_space<vmem>>, vector<31x128xf32>
    %c1 = arith.constant 1 : index
    %c0_1 = arith.constant 0 : index
    %1 = tpu.strided_load %arg0[%c1, %c0_1] {strides = array<i32: 2, 1>} : memref<128x128xf32, #tpu.memory_space<vmem>>, vector<31x128xf32>
    %c2 = arith.constant 2 : index
    %c0_2 = arith.constant 0 : index
    %2 = tpu.strided_load %arg0[%c2, %c0_2] {strides = array<i32: 2, 1>} : memref<128x128xf32, #tpu.memory_space<vmem>>, vector<31x128xf32>
    %3 = tpu.concatenate %0, %1, %2 in 1 : vector<31x128xf32>, vector<31x128xf32>, vector<31x128xf32> -> vector<31x384xf32>
    %c0_3 = arith.constant 0 : index
    %c0_4 = arith.constant 0 : index
    %4 = vector.load %arg1[%c0_3, %c0_4] : memref<384x128xf32, #tpu.memory_space<vmem>>, vector<384x128xf32>
    %cst = arith.constant dense<0.000000e+00> : vector<31x128xf32>
    %5 = tpu.matmul %3, %4, %cst {dimension_numbers = #tpu.dot_dimension_numbers<[1], [0], [0], [1], [0, 0, 1, 1], [], []>} : vector<31x384xf32>, vector<384x128xf32>, vector<31x128xf32> -> vector<31x128xf32>
    %cst_5 = arith.constant dense<0.000000e+00> : vector<128xf32>
    %6 = vector.multi_reduction <add>, %5, %cst_5 [0] : vector<31x128xf32> to vector<128xf32>
    %7 = vector.shape_cast %6 : vector<128xf32> to vector<1x128xf32>
    %c64 = arith.constant 64 : index
    %c0_6 = arith.constant 0 : index
    %8 = tpu.strided_load %arg0[%c64, %c0_6] {strides = array<i32: 2, 1>} : memref<128x128xf32, #tpu.memory_space<vmem>>, vector<31x128xf32>
    %c65 = arith.constant 65 : index
    %c0_7 = arith.constant 0 : index
    %9 = tpu.strided_load %arg0[%c65, %c0_7] {strides = array<i32: 2, 1>} : memref<128x128xf32, #tpu.memory_space<vmem>>, vector<31x128xf32>
    %c66 = arith.constant 66 : index
    %c0_8 = arith.constant 0 : index
    %10 = tpu.strided_load %arg0[%c66, %c0_8] {strides = array<i32: 2, 1>} : memref<128x128xf32, #tpu.memory_space<vmem>>, vector<31x128xf32>
    %11 = tpu.concatenate %8, %9, %10 in 1 : vector<31x128xf32>, vector<31x128xf32>, vector<31x128xf32> -> vector<31x384xf32>
    %c0_9 = arith.constant 0 : index
    %c0_10 = arith.constant 0 : index
    %12 = vector.load %arg1[%c0_9, %c0_10] : memref<384x128xf32, #tpu.memory_space<vmem>>, vector<384x128xf32>
    %cst_11 = arith.constant dense<0.000000e+00> : vector<31x128xf32>
    %13 = tpu.matmul %11, %12, %cst_11 {dimension_numbers = #tpu.dot_dimension_numbers<[1], [0], [0], [1], [0, 0, 1, 1], [], []>} : vector<31x384xf32>, vector<384x128xf32>, vector<31x128xf32> -> vector<31x128xf32>
    %cst_12 = arith.constant dense<0.000000e+00> : vector<128xf32>
    %14 = vector.multi_reduction <add>, %13, %cst_12 [0] : vector<31x128xf32> to vector<128xf32>
    %15 = vector.shape_cast %14 : vector<128xf32> to vector<1x128xf32>
    %16 = arith.addf %7, %15 : vector<1x128xf32>
    %cst_13 = arith.constant 0.0161290318 : f32
    %17 = vector.broadcast %cst_13 : f32 to vector<1x128xf32>
    %18 = arith.mulf %16, %17 : vector<1x128xf32>
    %19 = vector.broadcast %18 : vector<1x128xf32> to vector<31x128xf32>
    %20 = arith.subf %5, %19 : vector<31x128xf32>
    %21 = vector.broadcast %18 : vector<1x128xf32> to vector<31x128xf32>
    %22 = arith.subf %13, %21 : vector<31x128xf32>
    %23 = arith.mulf %20, %20 : vector<31x128xf32>
    %cst_14 = arith.constant dense<0.000000e+00> : vector<128xf32>
    %24 = vector.multi_reduction <add>, %23, %cst_14 [0] : vector<31x128xf32> to vector<128xf32>
    %25 = vector.shape_cast %24 : vector<128xf32> to vector<1x128xf32>
    %26 = arith.mulf %22, %22 : vector<31x128xf32>
    %cst_15 = arith.constant dense<0.000000e+00> : vector<128xf32>
    %27 = vector.multi_reduction <add>, %26, %cst_15 [0] : vector<31x128xf32> to vector<128xf32>
    %28 = vector.shape_cast %27 : vector<128xf32> to vector<1x128xf32>
    %29 = arith.addf %25, %28 : vector<1x128xf32>
    %cst_16 = arith.constant 0.0161290318 : f32
    %30 = vector.broadcast %cst_16 : f32 to vector<1x128xf32>
    %31 = arith.mulf %29, %30 : vector<1x128xf32>
    %c0_17 = arith.constant 0 : index
    %c0_18 = arith.constant 0 : index
    %32 = vector.load %arg5[%c0_17, %c0_18] : memref<1x128xf32, #tpu.memory_space<vmem>>, vector<1x128xf32>
    %cst_19 = arith.constant 9.99999974E-6 : f32
    %33 = vector.broadcast %cst_19 : f32 to vector<1x128xf32>
    %34 = arith.addf %31, %33 : vector<1x128xf32>
    %35 = math.rsqrt %34 : vector<1x128xf32>
    %36 = arith.mulf %32, %35 : vector<1x128xf32>
    %c0_20 = arith.constant 0 : index
    %c0_21 = arith.constant 0 : index
    %37 = vector.load %arg6[%c0_20, %c0_21] : memref<1x128xf32, #tpu.memory_space<vmem>>, vector<1x128xf32>
    %38 = vector.broadcast %36 : vector<1x128xf32> to vector<31x128xf32>
    %39 = arith.mulf %20, %38 : vector<31x128xf32>
    %40 = vector.broadcast %37 : vector<1x128xf32> to vector<31x128xf32>
    %41 = arith.addf %39, %40 : vector<31x128xf32>
    %cst_22 = arith.constant 0.000000e+00 : f32
    %42 = vector.broadcast %cst_22 : f32 to vector<31x128xf32>
    %43 = arith.cmpf oge, %41, %42 : vector<31x128xf32>
    %cst_23 = arith.constant 2.000000e-01 : f32
    %44 = vector.broadcast %cst_23 : f32 to vector<31x128xf32>
    %45 = arith.mulf %44, %41 : vector<31x128xf32>
    %46 = arith.select %43, %41, %45 : vector<31x128xi1>, vector<31x128xf32>
    %c0_24 = arith.constant 0 : index
    %c0_25 = arith.constant 0 : index
    %47 = vector.load %arg13[%c0_24, %c0_25] : memref<64x128xf32, #tpu.memory_space<vmem>>, vector<31x128xf32>
    tpu.vector_store %arg13[%c0_24, %c0_25], %46 {strides = array<i32>} : memref<64x128xf32, #tpu.memory_space<vmem>>, vector<31x128xf32>,
    %48 = vector.broadcast %36 : vector<1x128xf32> to vector<31x128xf32>
    %49 = arith.mulf %22, %48 : vector<31x128xf32>
    %50 = vector.broadcast %37 : vector<1x128xf32> to vector<31x128xf32>
    %51 = arith.addf %49, %50 : vector<31x128xf32>
    %cst_26 = arith.constant 0.000000e+00 : f32
    %52 = vector.broadcast %cst_26 : f32 to vector<31x128xf32>
    %53 = arith.cmpf oge, %51, %52 : vector<31x128xf32>
    %cst_27 = arith.constant 2.000000e-01 : f32
    %54 = vector.broadcast %cst_27 : f32 to vector<31x128xf32>
    %55 = arith.mulf %54, %51 : vector<31x128xf32>
    %56 = arith.select %53, %51, %55 : vector<31x128xi1>, vector<31x128xf32>
    %c32 = arith.constant 32 : index
    %c0_28 = arith.constant 0 : index
    %57 = vector.load %arg13[%c32, %c0_28] : memref<64x128xf32, #tpu.memory_space<vmem>>, vector<31x128xf32>
    tpu.vector_store %arg13[%c32, %c0_28], %56 {strides = array<i32>} : memref<64x128xf32, #tpu.memory_space<vmem>>, vector<31x128xf32>,
    %c0_29 = arith.constant 0 : index
    %c0_30 = arith.constant 0 : index
    %58 = tpu.strided_load %arg13[%c0_29, %c0_30] {strides = array<i32: 2, 1>} : memref<64x128xf32, #tpu.memory_space<vmem>>, vector<15x128xf32>
    %c1_31 = arith.constant 1 : index
    %c0_32 = arith.constant 0 : index
    %59 = tpu.strided_load %arg13[%c1_31, %c0_32] {strides = array<i32: 2, 1>} : memref<64x128xf32, #tpu.memory_space<vmem>>, vector<15x128xf32>
    %c2_33 = arith.constant 2 : index
    %c0_34 = arith.constant 0 : index
    %60 = tpu.strided_load %arg13[%c2_33, %c0_34] {strides = array<i32: 2, 1>} : memref<64x128xf32, #tpu.memory_space<vmem>>, vector<15x128xf32>
    %61 = tpu.concatenate %58, %59, %60 in 1 : vector<15x128xf32>, vector<15x128xf32>, vector<15x128xf32> -> vector<15x384xf32>
    %c0_35 = arith.constant 0 : index
    %c0_36 = arith.constant 0 : index
    %62 = vector.load %arg2[%c0_35, %c0_36] : memref<384x128xf32, #tpu.memory_space<vmem>>, vector<384x128xf32>
    %cst_37 = arith.constant dense<0.000000e+00> : vector<15x128xf32>
    %63 = tpu.matmul %61, %62, %cst_37 {dimension_numbers = #tpu.dot_dimension_numbers<[1], [0], [0], [1], [0, 0, 1, 1], [], []>} : vector<15x384xf32>, vector<384x128xf32>, vector<15x128xf32> -> vector<15x128xf32>
    %cst_38 = arith.constant dense<0.000000e+00> : vector<128xf32>
    %64 = vector.multi_reduction <add>, %63, %cst_38 [0] : vector<15x128xf32> to vector<128xf32>
    %65 = vector.shape_cast %64 : vector<128xf32> to vector<1x128xf32>
    %c32_39 = arith.constant 32 : index
    %c0_40 = arith.constant 0 : index
    %66 = tpu.strided_load %arg13[%c32_39, %c0_40] {strides = array<i32: 2, 1>} : memref<64x128xf32, #tpu.memory_space<vmem>>, vector<15x128xf32>
    %c33 = arith.constant 33 : index
    %c0_41 = arith.constant 0 : index
    %67 = tpu.strided_load %arg13[%c33, %c0_41] {strides = array<i32: 2, 1>} : memref<64x128xf32, #tpu.memory_space<vmem>>, vector<15x128xf32>
    %c34 = arith.constant 34 : index
    %c0_42 = arith.constant 0 : index
    %68 = tpu.strided_load %arg13[%c34, %c0_42] {strides = array<i32: 2, 1>} : memref<64x128xf32, #tpu.memory_space<vmem>>, vector<15x128xf32>
    %69 = tpu.concatenate %66, %67, %68 in 1 : vector<15x128xf32>, vector<15x128xf32>, vector<15x128xf32> -> vector<15x384xf32>
    %c0_43 = arith.constant 0 : index
    %c0_44 = arith.constant 0 : index
    %70 = vector.load %arg2[%c0_43, %c0_44] : memref<384x128xf32, #tpu.memory_space<vmem>>, vector<384x128xf32>
    %cst_45 = arith.constant dense<0.000000e+00> : vector<15x128xf32>
    %71 = tpu.matmul %69, %70, %cst_45 {dimension_numbers = #tpu.dot_dimension_numbers<[1], [0], [0], [1], [0, 0, 1, 1], [], []>} : vector<15x384xf32>, vector<384x128xf32>, vector<15x128xf32> -> vector<15x128xf32>
    %cst_46 = arith.constant dense<0.000000e+00> : vector<128xf32>
    %72 = vector.multi_reduction <add>, %71, %cst_46 [0] : vector<15x128xf32> to vector<128xf32>
    %73 = vector.shape_cast %72 : vector<128xf32> to vector<1x128xf32>
    %74 = arith.addf %65, %73 : vector<1x128xf32>
    %cst_47 = arith.constant 0.0333333351 : f32
    %75 = vector.broadcast %cst_47 : f32 to vector<1x128xf32>
    %76 = arith.mulf %74, %75 : vector<1x128xf32>
    %77 = vector.broadcast %76 : vector<1x128xf32> to vector<15x128xf32>
    %78 = arith.subf %63, %77 : vector<15x128xf32>
    %79 = vector.broadcast %76 : vector<1x128xf32> to vector<15x128xf32>
    %80 = arith.subf %71, %79 : vector<15x128xf32>
    %81 = arith.mulf %78, %78 : vector<15x128xf32>
    %cst_48 = arith.constant dense<0.000000e+00> : vector<128xf32>
    %82 = vector.multi_reduction <add>, %81, %cst_48 [0] : vector<15x128xf32> to vector<128xf32>
    %83 = vector.shape_cast %82 : vector<128xf32> to vector<1x128xf32>
    %84 = arith.mulf %80, %80 : vector<15x128xf32>
    %cst_49 = arith.constant dense<0.000000e+00> : vector<128xf32>
    %85 = vector.multi_reduction <add>, %84, %cst_49 [0] : vector<15x128xf32> to vector<128xf32>
    %86 = vector.shape_cast %85 : vector<128xf32> to vector<1x128xf32>
    %87 = arith.addf %83, %86 : vector<1x128xf32>
    %cst_50 = arith.constant 0.0333333351 : f32
    %88 = vector.broadcast %cst_50 : f32 to vector<1x128xf32>
    %89 = arith.mulf %87, %88 : vector<1x128xf32>
    %c0_51 = arith.constant 0 : index
    %c0_52 = arith.constant 0 : index
    %90 = vector.load %arg7[%c0_51, %c0_52] : memref<1x128xf32, #tpu.memory_space<vmem>>, vector<1x128xf32>
    %cst_53 = arith.constant 9.99999974E-6 : f32
    %91 = vector.broadcast %cst_53 : f32 to vector<1x128xf32>
    %92 = arith.addf %89, %91 : vector<1x128xf32>
    %93 = math.rsqrt %92 : vector<1x128xf32>
    %94 = arith.mulf %90, %93 : vector<1x128xf32>
    %c0_54 = arith.constant 0 : index
    %c0_55 = arith.constant 0 : index
    %95 = vector.load %arg8[%c0_54, %c0_55] : memref<1x128xf32, #tpu.memory_space<vmem>>, vector<1x128xf32>
    %96 = vector.broadcast %94 : vector<1x128xf32> to vector<15x128xf32>
    %97 = arith.mulf %78, %96 : vector<15x128xf32>
    %98 = vector.broadcast %95 : vector<1x128xf32> to vector<15x128xf32>
    %99 = arith.addf %97, %98 : vector<15x128xf32>
    %cst_56 = arith.constant 0.000000e+00 : f32
    %100 = vector.broadcast %cst_56 : f32 to vector<15x128xf32>
    %101 = arith.cmpf oge, %99, %100 : vector<15x128xf32>
    %cst_57 = arith.constant 2.000000e-01 : f32
    %102 = vector.broadcast %cst_57 : f32 to vector<15x128xf32>
    %103 = arith.mulf %102, %99 : vector<15x128xf32>
    %104 = arith.select %101, %99, %103 : vector<15x128xi1>, vector<15x128xf32>
    %c0_58 = arith.constant 0 : index
    %c0_59 = arith.constant 0 : index
    %105 = vector.load %arg14[%c0_58, %c0_59] : memref<32x128xf32, #tpu.memory_space<vmem>>, vector<15x128xf32>
    tpu.vector_store %arg14[%c0_58, %c0_59], %104 {strides = array<i32>} : memref<32x128xf32, #tpu.memory_space<vmem>>, vector<15x128xf32>,
    %106 = vector.broadcast %94 : vector<1x128xf32> to vector<15x128xf32>
    %107 = arith.mulf %80, %106 : vector<15x128xf32>
    %108 = vector.broadcast %95 : vector<1x128xf32> to vector<15x128xf32>
    %109 = arith.addf %107, %108 : vector<15x128xf32>
    %cst_60 = arith.constant 0.000000e+00 : f32
    %110 = vector.broadcast %cst_60 : f32 to vector<15x128xf32>
    %111 = arith.cmpf oge, %109, %110 : vector<15x128xf32>
    %cst_61 = arith.constant 2.000000e-01 : f32
    %112 = vector.broadcast %cst_61 : f32 to vector<15x128xf32>
    %113 = arith.mulf %112, %109 : vector<15x128xf32>
    %114 = arith.select %111, %109, %113 : vector<15x128xi1>, vector<15x128xf32>
    %c16 = arith.constant 16 : index
    %c0_62 = arith.constant 0 : index
    %115 = vector.load %arg14[%c16, %c0_62] : memref<32x128xf32, #tpu.memory_space<vmem>>, vector<15x128xf32>
    tpu.vector_store %arg14[%c16, %c0_62], %114 {strides = array<i32>} : memref<32x128xf32, #tpu.memory_space<vmem>>, vector<15x128xf32>,
    %c0_63 = arith.constant 0 : index
    %c0_64 = arith.constant 0 : index
    %116 = tpu.strided_load %arg14[%c0_63, %c0_64] {strides = array<i32: 2, 1>} : memref<32x128xf32, #tpu.memory_space<vmem>>, vector<7x128xf32>
    %c1_65 = arith.constant 1 : index
    %c0_66 = arith.constant 0 : index
    %117 = tpu.strided_load %arg14[%c1_65, %c0_66] {strides = array<i32: 2, 1>} : memref<32x128xf32, #tpu.memory_space<vmem>>, vector<7x128xf32>
    %c2_67 = arith.constant 2 : index
    %c0_68 = arith.constant 0 : index
    %118 = tpu.strided_load %arg14[%c2_67, %c0_68] {strides = array<i32: 2, 1>} : memref<32x128xf32, #tpu.memory_space<vmem>>, vector<7x128xf32>
    %119 = tpu.concatenate %116, %117, %118 in 1 : vector<7x128xf32>, vector<7x128xf32>, vector<7x128xf32> -> vector<7x384xf32>
    %c0_69 = arith.constant 0 : index
    %c0_70 = arith.constant 0 : index
    %120 = vector.load %arg3[%c0_69, %c0_70] : memref<384x128xf32, #tpu.memory_space<vmem>>, vector<384x128xf32>
    %cst_71 = arith.constant dense<0.000000e+00> : vector<7x128xf32>
    %121 = tpu.matmul %119, %120, %cst_71 {dimension_numbers = #tpu.dot_dimension_numbers<[1], [0], [0], [1], [0, 0, 1, 1], [], []>} : vector<7x384xf32>, vector<384x128xf32>, vector<7x128xf32> -> vector<7x128xf32>
    %cst_72 = arith.constant dense<0.000000e+00> : vector<128xf32>
    %122 = vector.multi_reduction <add>, %121, %cst_72 [0] : vector<7x128xf32> to vector<128xf32>
    %123 = vector.shape_cast %122 : vector<128xf32> to vector<1x128xf32>
    %c16_73 = arith.constant 16 : index
    %c0_74 = arith.constant 0 : index
    %124 = tpu.strided_load %arg14[%c16_73, %c0_74] {strides = array<i32: 2, 1>} : memref<32x128xf32, #tpu.memory_space<vmem>>, vector<7x128xf32>
    %c17 = arith.constant 17 : index
    %c0_75 = arith.constant 0 : index
    %125 = tpu.strided_load %arg14[%c17, %c0_75] {strides = array<i32: 2, 1>} : memref<32x128xf32, #tpu.memory_space<vmem>>, vector<7x128xf32>
    %c18 = arith.constant 18 : index
    %c0_76 = arith.constant 0 : index
    %126 = tpu.strided_load %arg14[%c18, %c0_76] {strides = array<i32: 2, 1>} : memref<32x128xf32, #tpu.memory_space<vmem>>, vector<7x128xf32>
    %127 = tpu.concatenate %124, %125, %126 in 1 : vector<7x128xf32>, vector<7x128xf32>, vector<7x128xf32> -> vector<7x384xf32>
    %c0_77 = arith.constant 0 : index
    %c0_78 = arith.constant 0 : index
    %128 = vector.load %arg3[%c0_77, %c0_78] : memref<384x128xf32, #tpu.memory_space<vmem>>, vector<384x128xf32>
    %cst_79 = arith.constant dense<0.000000e+00> : vector<7x128xf32>
    %129 = tpu.matmul %127, %128, %cst_79 {dimension_numbers = #tpu.dot_dimension_numbers<[1], [0], [0], [1], [0, 0, 1, 1], [], []>} : vector<7x384xf32>, vector<384x128xf32>, vector<7x128xf32> -> vector<7x128xf32>
    %cst_80 = arith.constant dense<0.000000e+00> : vector<128xf32>
    %130 = vector.multi_reduction <add>, %129, %cst_80 [0] : vector<7x128xf32> to vector<128xf32>
    %131 = vector.shape_cast %130 : vector<128xf32> to vector<1x128xf32>
    %132 = arith.addf %123, %131 : vector<1x128xf32>
    %cst_81 = arith.constant 0.0714285746 : f32
    %133 = vector.broadcast %cst_81 : f32 to vector<1x128xf32>
    %134 = arith.mulf %132, %133 : vector<1x128xf32>
    %135 = vector.broadcast %134 : vector<1x128xf32> to vector<7x128xf32>
    %136 = arith.subf %121, %135 : vector<7x128xf32>
    %137 = vector.broadcast %134 : vector<1x128xf32> to vector<7x128xf32>
    %138 = arith.subf %129, %137 : vector<7x128xf32>
    %139 = arith.mulf %136, %136 : vector<7x128xf32>
    %cst_82 = arith.constant dense<0.000000e+00> : vector<128xf32>
    %140 = vector.multi_reduction <add>, %139, %cst_82 [0] : vector<7x128xf32> to vector<128xf32>
    %141 = vector.shape_cast %140 : vector<128xf32> to vector<1x128xf32>
    %142 = arith.mulf %138, %138 : vector<7x128xf32>
    %cst_83 = arith.constant dense<0.000000e+00> : vector<128xf32>
    %143 = vector.multi_reduction <add>, %142, %cst_83 [0] : vector<7x128xf32> to vector<128xf32>
    %144 = vector.shape_cast %143 : vector<128xf32> to vector<1x128xf32>
    %145 = arith.addf %141, %144 : vector<1x128xf32>
    %cst_84 = arith.constant 0.0714285746 : f32
    %146 = vector.broadcast %cst_84 : f32 to vector<1x128xf32>
    %147 = arith.mulf %145, %146 : vector<1x128xf32>
    %c0_85 = arith.constant 0 : index
    %c0_86 = arith.constant 0 : index
    %148 = vector.load %arg9[%c0_85, %c0_86] : memref<1x128xf32, #tpu.memory_space<vmem>>, vector<1x128xf32>
    %cst_87 = arith.constant 9.99999974E-6 : f32
    %149 = vector.broadcast %cst_87 : f32 to vector<1x128xf32>
    %150 = arith.addf %147, %149 : vector<1x128xf32>
    %151 = math.rsqrt %150 : vector<1x128xf32>
    %152 = arith.mulf %148, %151 : vector<1x128xf32>
    %c0_88 = arith.constant 0 : index
    %c0_89 = arith.constant 0 : index
    %153 = vector.load %arg10[%c0_88, %c0_89] : memref<1x128xf32, #tpu.memory_space<vmem>>, vector<1x128xf32>
    %154 = vector.broadcast %152 : vector<1x128xf32> to vector<7x128xf32>
    %155 = arith.mulf %136, %154 : vector<7x128xf32>
    %156 = vector.broadcast %153 : vector<1x128xf32> to vector<7x128xf32>
    %157 = arith.addf %155, %156 : vector<7x128xf32>
    %cst_90 = arith.constant 0.000000e+00 : f32
    %158 = vector.broadcast %cst_90 : f32 to vector<7x128xf32>
    %159 = arith.cmpf oge, %157, %158 : vector<7x128xf32>
    %cst_91 = arith.constant 2.000000e-01 : f32
    %160 = vector.broadcast %cst_91 : f32 to vector<7x128xf32>
    %161 = arith.mulf %160, %157 : vector<7x128xf32>
    %162 = arith.select %159, %157, %161 : vector<7x128xi1>, vector<7x128xf32>
    %c0_92 = arith.constant 0 : index
    %c0_93 = arith.constant 0 : index
    %163 = vector.load %arg15[%c0_92, %c0_93] : memref<16x128xf32, #tpu.memory_space<vmem>>, vector<7x128xf32>
    tpu.vector_store %arg15[%c0_92, %c0_93], %162 {strides = array<i32>} : memref<16x128xf32, #tpu.memory_space<vmem>>, vector<7x128xf32>,
    %164 = vector.broadcast %152 : vector<1x128xf32> to vector<7x128xf32>
    %165 = arith.mulf %138, %164 : vector<7x128xf32>
    %166 = vector.broadcast %153 : vector<1x128xf32> to vector<7x128xf32>
    %167 = arith.addf %165, %166 : vector<7x128xf32>
    %cst_94 = arith.constant 0.000000e+00 : f32
    %168 = vector.broadcast %cst_94 : f32 to vector<7x128xf32>
    %169 = arith.cmpf oge, %167, %168 : vector<7x128xf32>
    %cst_95 = arith.constant 2.000000e-01 : f32
    %170 = vector.broadcast %cst_95 : f32 to vector<7x128xf32>
    %171 = arith.mulf %170, %167 : vector<7x128xf32>
    %172 = arith.select %169, %167, %171 : vector<7x128xi1>, vector<7x128xf32>
    %c8 = arith.constant 8 : index
    %c0_96 = arith.constant 0 : index
    %173 = vector.load %arg15[%c8, %c0_96] : memref<16x128xf32, #tpu.memory_space<vmem>>, vector<7x128xf32>
    tpu.vector_store %arg15[%c8, %c0_96], %172 {strides = array<i32>} : memref<16x128xf32, #tpu.memory_space<vmem>>, vector<7x128xf32>,
    %c0_97 = arith.constant 0 : index
    %c0_98 = arith.constant 0 : index
    %174 = tpu.strided_load %arg15[%c0_97, %c0_98] {strides = array<i32: 2, 1>} : memref<16x128xf32, #tpu.memory_space<vmem>>, vector<3x128xf32>
    %c1_99 = arith.constant 1 : index
    %c0_100 = arith.constant 0 : index
    %175 = tpu.strided_load %arg15[%c1_99, %c0_100] {strides = array<i32: 2, 1>} : memref<16x128xf32, #tpu.memory_space<vmem>>, vector<3x128xf32>
    %c2_101 = arith.constant 2 : index
    %c0_102 = arith.constant 0 : index
    %176 = tpu.strided_load %arg15[%c2_101, %c0_102] {strides = array<i32: 2, 1>} : memref<16x128xf32, #tpu.memory_space<vmem>>, vector<3x128xf32>
    %177 = tpu.concatenate %174, %175, %176 in 1 : vector<3x128xf32>, vector<3x128xf32>, vector<3x128xf32> -> vector<3x384xf32>
    %c0_103 = arith.constant 0 : index
    %c0_104 = arith.constant 0 : index
    %178 = vector.load %arg4[%c0_103, %c0_104] : memref<384x128xf32, #tpu.memory_space<vmem>>, vector<384x128xf32>
    %cst_105 = arith.constant dense<0.000000e+00> : vector<3x128xf32>
    %179 = tpu.matmul %177, %178, %cst_105 {dimension_numbers = #tpu.dot_dimension_numbers<[1], [0], [0], [1], [0, 0, 1, 1], [], []>} : vector<3x384xf32>, vector<384x128xf32>, vector<3x128xf32> -> vector<3x128xf32>
    %c0_106 = arith.constant 0 : index
    %c0_107 = arith.constant 0 : index
    %180 = vector.load %arg11[%c0_106, %c0_107] : memref<1x128xf32, #tpu.memory_space<vmem>>, vector<1x128xf32>
    %181 = vector.broadcast %180 : vector<1x128xf32> to vector<3x128xf32>
    %182 = arith.addf %179, %181 : vector<3x128xf32>
    %c0_108 = arith.constant 0 : index
    %c0_109 = arith.constant 0 : index
    %c0_110 = arith.constant 0 : index
    %183 = vector.load %arg12[%c0_108, %c0_109, %c0_110] : memref<2x3x128xf32, #tpu.memory_space<vmem>>, vector<1x3x128xf32>
    %184 = vector.shape_cast %183 : vector<1x3x128xf32> to vector<3x128xf32>
    %185 = vector.shape_cast %182 : vector<3x128xf32> to vector<1x3x128xf32>
    tpu.vector_store %arg12[%c0_108, %c0_109, %c0_110], %185 {strides = array<i32>} : memref<2x3x128xf32, #tpu.memory_space<vmem>>, vector<1x3x128xf32>,
    %c8_111 = arith.constant 8 : index
    %c0_112 = arith.constant 0 : index
    %186 = tpu.strided_load %arg15[%c8_111, %c0_112] {strides = array<i32: 2, 1>} : memref<16x128xf32, #tpu.memory_space<vmem>>, vector<3x128xf32>
    %c9 = arith.constant 9 : index
    %c0_113 = arith.constant 0 : index
    %187 = tpu.strided_load %arg15[%c9, %c0_113] {strides = array<i32: 2, 1>} : memref<16x128xf32, #tpu.memory_space<vmem>>, vector<3x128xf32>
    %c10 = arith.constant 10 : index
    %c0_114 = arith.constant 0 : index
    %188 = tpu.strided_load %arg15[%c10, %c0_114] {strides = array<i32: 2, 1>} : memref<16x128xf32, #tpu.memory_space<vmem>>, vector<3x128xf32>
    %189 = tpu.concatenate %186, %187, %188 in 1 : vector<3x128xf32>, vector<3x128xf32>, vector<3x128xf32> -> vector<3x384xf32>
    %c0_115 = arith.constant 0 : index
    %c0_116 = arith.constant 0 : index
    %190 = vector.load %arg4[%c0_115, %c0_116] : memref<384x128xf32, #tpu.memory_space<vmem>>, vector<384x128xf32>
    %cst_117 = arith.constant dense<0.000000e+00> : vector<3x128xf32>
    %191 = tpu.matmul %189, %190, %cst_117 {dimension_numbers = #tpu.dot_dimension_numbers<[1], [0], [0], [1], [0, 0, 1, 1], [], []>} : vector<3x384xf32>, vector<384x128xf32>, vector<3x128xf32> -> vector<3x128xf32>
    %c0_118 = arith.constant 0 : index
    %c0_119 = arith.constant 0 : index
    %192 = vector.load %arg11[%c0_118, %c0_119] : memref<1x128xf32, #tpu.memory_space<vmem>>, vector<1x128xf32>
    %193 = vector.broadcast %192 : vector<1x128xf32> to vector<3x128xf32>
    %194 = arith.addf %191, %193 : vector<3x128xf32>
    %c1_120 = arith.constant 1 : index
    %c0_121 = arith.constant 0 : index
    %c0_122 = arith.constant 0 : index
    %195 = vector.load %arg12[%c1_120, %c0_121, %c0_122] : memref<2x3x128xf32, #tpu.memory_space<vmem>>, vector<1x3x128xf32>
    %196 = vector.shape_cast %195 : vector<1x3x128xf32> to vector<3x128xf32>
    %197 = vector.shape_cast %194 : vector<3x128xf32> to vector<1x3x128xf32>
    tpu.vector_store %arg12[%c1_120, %c0_121, %c0_122], %197 {strides = array<i32>} : memref<2x3x128xf32, #tpu.memory_space<vmem>>, vector<1x3x128xf32>,
    return
  }
}

</mosaic_0001>

<llo_original>
// kernel: classifier_forward.1
$region0: #{classifier_forward.1}
  #allocation0 [shape = 'u32[]', space=smem, size = 0x4, offset = 0x4, fixed_abs, tag = 'smem constant byte address 0x4 - core index']
  #allocation1 [shape = 'u32[144,128]{1,0:T(1,128)}', space=vmem, size = 0x12000, scoped, tag = 'internal scratch']
  #allocation2 [shape = 'f32[64,128]{1,0:T(8,128)}', space=vmem, size = 0x8000, scoped, tag = 'scratch operand']
  #allocation3 [shape = 'f32[32,128]{1,0:T(8,128)}', space=vmem, size = 0x4000, scoped, tag = 'scratch operand']
  #allocation4 [shape = 'f32[16,128]{1,0:T(8,128)}', space=vmem, size = 0x2000, scoped, tag = 'scratch operand']
  %s0 = inlined_call_operand.vmem [shape: f32[128,128], index: 0, kind: input, shape index: {}]
  %s1 = inlined_call_operand.vmem [shape: f32[384,128], index: 1, kind: input, shape index: {}]
  %s2 = inlined_call_operand.hbm [shape: f32[384,128], index: 2, kind: input, shape index: {}]
  %s3 = inlined_call_operand.hbm [shape: f32[384,128], index: 3, kind: input, shape index: {}]
  %s4 = inlined_call_operand.hbm [shape: f32[384,128], index: 4, kind: input, shape index: {}]
  %s5 = inlined_call_operand.vmem [shape: f32[1,128], index: 5, kind: input, shape index: {}]
  %s6 = inlined_call_operand.vmem [shape: f32[1,128], index: 6, kind: input, shape index: {}]
  %s7 = inlined_call_operand.vmem [shape: f32[1,128], index: 7, kind: input, shape index: {}]
  %s8 = inlined_call_operand.vmem [shape: f32[1,128], index: 8, kind: input, shape index: {}]
  %s9 = inlined_call_operand.vmem [shape: f32[1,128], index: 9, kind: input, shape index: {}]
  %s10 = inlined_call_operand.vmem [shape: f32[1,128], index: 10, kind: input, shape index: {}]
  %s11 = inlined_call_operand.vmem [shape: f32[1,128], index: 11, kind: input, shape index: {}]
  %s12 = inlined_call_operand.vmem [shape: f32[2,3,128], index: 12, kind: output, shape index: {}]
  %s13 = sld [smem:[#allocation0]]
  $region70: #{classifier_forward.1} parent=0
    _
  %s15 = ssub.s32 1, %s13
  %s16 = scalar_select 0, %s15, %s13
  $region1: #{classifier_forward.1} parent=0
    #allocation5 [shape = 'u8[196608]{0}', space=vmem, size = 0x30000, scoped, tag = 'input window, operand 2, single buffered']
    #allocation6 [shape = 's32[1]{0}', space=sflag, size = 0x4, scoped, tag = 'scoped memory for classifier_forward.1']
    #allocation7 [shape = 'u8[196608]{0}', space=vmem, size = 0x30000, scoped, tag = 'input window, operand 3, single buffered']
    #allocation8 [shape = 's32[1]{0}', space=sflag, size = 0x4, scoped, tag = 'scoped memory for classifier_forward.1']
    #allocation9 [shape = 'u8[196608]{0}', space=vmem, size = 0x30000, scoped, tag = 'input window, operand 4, single buffered']
    %17 = vsyncpa [#allocation6], 0
    %18 = vsyncpa [#allocation8], 0
    // Predicated region
    $region2: #{classifier_forward.1} parent=1 // pred_check
      _
    $region3: #{classifier_forward.1} parent=1 // pred_check_branch
      %20 = sbr.rel (0) target = $region5
    $region4: #{classifier_forward.1} parent=1 // pred_region
      _
    $region5: #{classifier_forward.1} parent=1 // pred_fallthru
      _
    // Predicated region
    $region6: #{classifier_forward.1} parent=1 // pred_check
      _
    $region7: #{classifier_forward.1} parent=1 // pred_check_branch
      %22 = sbr.rel (0) target = $region9
    $region8: #{classifier_forward.1} parent=1 // pred_region
      _
    $region9: #{classifier_forward.1} parent=1 // pred_fallthru
      _
    // Predicated region
    $region10: #{classifier_forward.1} parent=1 // pred_check
      _
    $region11: #{classifier_forward.1} parent=1 // pred_check_branch
      %24 = sbr.rel (0) target = $region13
    $region12: #{classifier_forward.1} parent=1 // pred_region
      %s26 = ssub.s32 6144, 6144
      %27 = vsyncadd [#allocation6], %s26
      %s28 = sshll.u32 [#allocation5], 4
      %s29 = int_to_ptr.vmem [resolvable:$true] %s28
      %34 = dma.hbm_to_vmem [thread:$0]  %s2, 6144, %s29, [#allocation6], 128, 128, 8
    $region13: #{classifier_forward.1} parent=1 // pred_fallthru
      _
    // Predicated region
    $region14: #{classifier_forward.1} parent=1 // pred_check
      _
    $region15: #{classifier_forward.1} parent=1 // pred_check_branch
      %36 = sbr.rel (0) target = $region17
    $region16: #{classifier_forward.1} parent=1 // pred_region
      %s38 = ssub.s32 6144, 6144
      %39 = vsyncadd [#allocation8], %s38
      %s40 = sshll.u32 [#allocation7], 4
      %s41 = int_to_ptr.vmem [resolvable:$true] %s40
      %46 = dma.hbm_to_vmem [thread:$0]  %s3, 6144, %s41, [#allocation8], 128, 128, 8
    $region17: #{classifier_forward.1} parent=1 // pred_fallthru
      _
    // Predicated region
    $region18: #{classifier_forward.1} parent=1 // pred_check
      _
    $region19: #{classifier_forward.1} parent=1 // pred_check_branch
      %48 = sbr.rel (0) target = $region21
    $region20: #{classifier_forward.1} parent=1 // pred_region
      %s50 = ssub.s32 6144, 6144
      %51 = vsyncadd [#allocation8], %s50
      %s52 = sshll.u32 [#allocation9], 4
      %s53 = int_to_ptr.vmem [resolvable:$true] %s52
      %58 = dma.hbm_to_vmem [thread:$0]  %s4, 6144, %s53, [#allocation8], 128, 128, 8
    $region21: #{classifier_forward.1} parent=1 // pred_fallthru
      _
    // Predicated region
    $region22: #{classifier_forward.1} parent=1 // pred_check
      _
    $region23: #{classifier_forward.1} parent=1 // pred_check_branch
      %60 = sbr.rel (0) target = $region25
    $region24: #{classifier_forward.1} parent=1 // pred_region
      _
    $region25: #{classifier_forward.1} parent=1 // pred_fallthru
      _
    // Predicated region
    $region26: #{classifier_forward.1} parent=1 // pred_check
      _
    $region27: #{classifier_forward.1} parent=1 // pred_check_branch
      %62 = sbr.rel (0) target = $region29
    $region28: #{classifier_forward.1} parent=1 // pred_region
      _
    $region29: #{classifier_forward.1} parent=1 // pred_fallthru
      _
    // Predicated region
    $region30: #{classifier_forward.1} parent=1 // pred_check
      _
    $region31: #{classifier_forward.1} parent=1 // pred_check_branch
      %64 = sbr.rel (0) target = $region33
    $region32: #{classifier_forward.1} parent=1 // pred_region
      _
    $region33: #{classifier_forward.1} parent=1 // pred_fallthru
      _
    // Predicated region
    $region34: #{classifier_forward.1} parent=1 // pred_check
      _
    $region35: #{classifier_forward.1} parent=1 // pred_check_branch
      %66 = sbr.rel (0) target = $region37
    $region36: #{classifier_forward.1} parent=1 // pred_region
      _
    $region37: #{classifier_forward.1} parent=1 // pred_fallthru
      _
    // Predicated region
    $region38: #{classifier_forward.1} parent=1 // pred_check
      _
    $region39: #{classifier_forward.1} parent=1 // pred_check_branch
      %68 = sbr.rel (0) target = $region41
    $region40: #{classifier_forward.1} parent=1 // pred_region
      _
    $region41: #{classifier_forward.1} parent=1 // pred_fallthru
      _
    // Predicated region
    $region42: #{classifier_forward.1} parent=1 // pred_check
      _
    $region43: #{classifier_forward.1} parent=1 // pred_check_branch
      %70 = sbr.rel (0) target = $region45
    $region44: #{classifier_forward.1} parent=1 // pred_region
      _
    $region45: #{classifier_forward.1} parent=1 // pred_fallthru
      _
    // Predicated region
    $region46: #{classifier_forward.1} parent=1 // pred_check
      _
    $region47: #{classifier_forward.1} parent=1 // pred_check_branch
      %72 = sbr.rel (0) target = $region49
    $region48: #{classifier_forward.1} parent=1 // pred_region
      _
    $region49: #{classifier_forward.1} parent=1 // pred_fallthru
      _
    // Predicated region
    $region50: #{classifier_forward.1} parent=1 // pred_check
      _
    $region51: #{classifier_forward.1} parent=1 // pred_check_branch
      %74 = sbr.rel (0) target = $region53
    $region52: #{classifier_forward.1} parent=1 // pred_region
      %75 = dma.done [#allocation6], 6144
    $region53: #{classifier_forward.1} parent=1 // pred_fallthru
      _
    // Predicated region
    $region54: #{classifier_forward.1} parent=1 // pred_check
      _
    $region55: #{classifier_forward.1} parent=1 // pred_check_branch
      %77 = sbr.rel (0) target = $region57
    $region56: #{classifier_forward.1} parent=1 // pred_region
      %78 = dma.done [#allocation8], 6144
    $region57: #{classifier_forward.1} parent=1 // pred_fallthru
      _
    // Predicated region
    $region58: #{classifier_forward.1} parent=1 // pred_check
      _
    $region59: #{classifier_forward.1} parent=1 // pred_check_branch
      %80 = sbr.rel (0) target = $region61
    $region60: #{classifier_forward.1} parent=1 // pred_region
      %81 = dma.done [#allocation8], 6144
    $region61: #{classifier_forward.1} parent=1 // pred_fallthru
      _
    %v82 = vld [vmem:[%s0] ss:$2 sm:$0xff]
    %s83 = scalar_lea.vmem %s0, 16
    %v84 = vld [vmem:[%s83] ss:$2 sm:$0xff]
    %s85 = scalar_lea.vmem %s0, 32
    %v86 = vld [vmem:[%s85] ss:$2 sm:$0xff]
    %s87 = scalar_lea.vmem %s0, 48
    %v88 = vld [vmem:[%s87] ss:$2 sm:$0x7f]
    %s89 = scalar_lea.vmem %s0, 1
    %v90 = vld [vmem:[%s89] ss:$2 sm:$0xff]
    %s91 = scalar_lea.vmem %s0, 17
    %v92 = vld [vmem:[%s91] ss:$2 sm:$0xff]
    %s93 = scalar_lea.vmem %s0, 33
    %v94 = vld [vmem:[%s93] ss:$2 sm:$0xff]
    %s95 = scalar_lea.vmem %s0, 49
    %v96 = vld [vmem:[%s95] ss:$2 sm:$0x7f]
    %s97 = scalar_lea.vmem %s0, 2
    %v98 = vld [vmem:[%s97] ss:$2 sm:$0xff]
    %s99 = scalar_lea.vmem %s0, 18
    %v100 = vld [vmem:[%s99] ss:$2 sm:$0xff]
    %s101 = scalar_lea.vmem %s0, 34
    %v102 = vld [vmem:[%s101] ss:$2 sm:$0xff]
    %s103 = scalar_lea.vmem %s0, 50
    %v104 = vld [vmem:[%s103] ss:$2 sm:$0x7f]
    %v105 = vld [vmem:[%s1] sm:$0xff]
    %v106 = vld [vmem:[%s1 + $0x8] sm:$0xff]
    %v107 = vld [vmem:[%s1 + $0x10] sm:$0xff]
    %v108 = vld [vmem:[%s1 + $0x18] sm:$0xff]
    %v109 = vld [vmem:[%s1 + $0x20] sm:$0xff]
    %v110 = vld [vmem:[%s1 + $0x28] sm:$0xff]
    %v111 = vld [vmem:[%s1 + $0x30] sm:$0xff]
    %v112 = vld [vmem:[%s1 + $0x38] sm:$0xff]
    %v113 = vld [vmem:[%s1 + $0x40] sm:$0xff]
    %v114 = vld [vmem:[%s1 + $0x48] sm:$0xff]
    %v115 = vld [vmem:[%s1 + $0x50] sm:$0xff]
    %v116 = vld [vmem:[%s1 + $0x58] sm:$0xff]
    %v117 = vld [vmem:[%s1 + $0x60] sm:$0xff]
    %v118 = vld [vmem:[%s1 + $0x68] sm:$0xff]
    %v119 = vld [vmem:[%s1 + $0x70] sm:$0xff]
    %v120 = vld [vmem:[%s1 + $0x78] sm:$0xff]
    %v121 = vld [vmem:[%s1 + $0x80] sm:$0xff]
    %v122 = vld [vmem:[%s1 + $0x88] sm:$0xff]
    %v123 = vld [vmem:[%s1 + $0x90] sm:$0xff]
    %v124 = vld [vmem:[%s1 + $0x98] sm:$0xff]
    %v125 = vld [vmem:[%s1 + $0xa0] sm:$0xff]
    %v126 = vld [vmem:[%s1 + $0xa8] sm:$0xff]
    %v127 = vld [vmem:[%s1 + $0xb0] sm:$0xff]
    %v128 = vld [vmem:[%s1 + $0xb8] sm:$0xff]
    %v129 = vld [vmem:[%s1 + $0xc0] sm:$0xff]
    %v130 = vld [vmem:[%s1 + $0xc8] sm:$0xff]
    %v131 = vld [vmem:[%s1 + $0xd0] sm:$0xff]
    %v132 = vld [vmem:[%s1 + $0xd8] sm:$0xff]
    %v133 = vld [vmem:[%s1 + $0xe0] sm:$0xff]
    %v134 = vld [vmem:[%s1 + $0xe8] sm:$0xff]
    %v135 = vld [vmem:[%s1 + $0xf0] sm:$0xff]
    %v136 = vld [vmem:[%s1 + $0xf8] sm:$0xff]
    %v137 = vld [vmem:[%s1 + $0x100] sm:$0xff]
    %v138 = vld [vmem:[%s1 + $0x108] sm:$0xff]
    %v139 = vld [vmem:[%s1 + $0x110] sm:$0xff]
    %v140 = vld [vmem:[%s1 + $0x118] sm:$0xff]
    %v141 = vld [vmem:[%s1 + $0x120] sm:$0xff]
    %v142 = vld [vmem:[%s1 + $0x128] sm:$0xff]
    %v143 = vld [vmem:[%s1 + $0x130] sm:$0xff]
    %v144 = vld [vmem:[%s1 + $0x138] sm:$0xff]
    %v145 = vld [vmem:[%s1 + $0x140] sm:$0xff]
    %v146 = vld [vmem:[%s1 + $0x148] sm:$0xff]
    %v147 = vld [vmem:[%s1 + $0x150] sm:$0xff]
    %v148 = vld [vmem:[%s1 + $0x158] sm:$0xff]
    %v149 = vld [vmem:[%s1 + $0x160] sm:$0xff]
    %v150 = vld [vmem:[%s1 + $0x168] sm:$0xff]
    %v151 = vld [vmem:[%s1 + $0x170] sm:$0xff]
    %v152 = vld [vmem:[%s1 + $0x178] sm:$0xff]
    %153 = vmatprep.subr.mxu0 0.0
    %154 = vmatpush1.msra.mxu0 %v120
    %155 = vmatprep.subr.mxu0 0.0
    %156 = vmatpush1.msra.mxu0 %v119
    %157 = vmatprep.subr.mxu0 0.0
    %158 = vmatpush1.msra.mxu0 %v118
    %159 = vmatprep.subr.mxu0 0.0
    %160 = vmatpush1.msra.mxu0 %v117
    %161 = vmatprep.subr.mxu0 0.0
    %162 = vmatpush1.msra.mxu0 %v116
    %163 = vmatprep.subr.mxu0 0.0
    %164 = vmatpush1.msra.mxu0 %v115
    %165 = vmatprep.subr.mxu0 0.0
    %166 = vmatpush1.msra.mxu0 %v114
    %167 = vmatprep.subr.mxu0 0.0
    %168 = vmatpush1.msra.mxu0 %v113
    %169 = vmatprep.subr.mxu0 0.0
    %170 = vmatpush1.msra.mxu0 %v112
    %171 = vmatprep.subr.mxu0 0.0
    %172 = vmatpush1.msra.mxu0 %v111
    %173 = vmatprep.subr.mxu0 0.0
    %174 = vmatpush1.msra.mxu0 %v110
    %175 = vmatprep.subr.mxu0 0.0
    %176 = vmatpush1.msra.mxu0 %v109
    %177 = vmatprep.subr.mxu0 0.0
    %178 = vmatpush1.msra.mxu0 %v108
    %179 = vmatprep.subr.mxu0 0.0
    %180 = vmatpush1.msra.mxu0 %v107
    %181 = vmatprep.subr.mxu0 0.0
    %182 = vmatpush1.msra.mxu0 %v106
    %183 = vmatprep.subr.mxu0 0.0
    %184 = vmatpush1.msra.mxu0 %v105
    %185 = vmatprep.subr.mxu0 0.0
    %186 = vmatpush2.msra.mxu0 %v136
    %187 = vmatprep.subr.mxu0 0.0
    %188 = vmatpush2.msra.mxu0 %v135
    %189 = vmatprep.subr.mxu0 0.0
    %190 = vmatpush2.msra.mxu0 %v134
    %191 = vmatprep.subr.mxu0 0.0
    %192 = vmatpush2.msra.mxu0 %v133
    %193 = vmatprep.subr.mxu0 0.0
    %194 = vmatpush2.msra.mxu0 %v132
    %195 = vmatprep.subr.mxu0 0.0
    %196 = vmatpush2.msra.mxu0 %v131
    %197 = vmatprep.subr.mxu0 0.0
    %198 = vmatpush2.msra.mxu0 %v130
    %199 = vmatprep.subr.mxu0 0.0
    %200 = vmatpush2.msra.mxu0 %v129
    %201 = vmatprep.subr.mxu0 0.0
    %202 = vmatpush2.msra.mxu0 %v128
    %203 = vmatprep.subr.mxu0 0.0
    %204 = vmatpush2.msra.mxu0 %v127
    %205 = vmatprep.subr.mxu0 0.0
    %206 = vmatpush2.msra.mxu0 %v126
    %207 = vmatprep.subr.mxu0 0.0
    %208 = vmatpush2.msra.mxu0 %v125
    %209 = vmatprep.subr.mxu0 0.0
    %210 = vmatpush2.msra.mxu0 %v124
    %211 = vmatprep.subr.mxu0 0.0
    %212 = vmatpush2.msra.mxu0 %v123
    %213 = vmatprep.subr.mxu0 0.0
    %214 = vmatpush2.msra.mxu0 %v122
    %215 = vmatprep.subr.mxu0 0.0
    %216 = vmatpush2.msra.mxu0 %v121
    %217 = vmatprep.mubr.f32.mxu0 %v90
    %218 = vmatmul.mubr.f32.gmra.mxu0 %v82
    %v219 = vpop.f32.mrf.mxu0
    %v220 = vadd.f32 0.0, %v219
    %v221 = vpop.f32.mrf.mxu0
    %222 = vmatprep.mubr.f32.mxu0 %v92
    %223 = vmatmul.mubr.f32.gmra.mxu0 %v84
    %v224 = vpop.f32.mrf.mxu0
    %v225 = vadd.f32 0.0, %v224
    %v226 = vpop.f32.mrf.mxu0
    %227 = vmatprep.mubr.f32.mxu0 %v94
    %228 = vmatmul.mubr.f32.gmra.mxu0 %v86
    %v229 = vpop.f32.mrf.mxu0
    %v230 = vadd.f32 0.0, %v229
    %v231 = vpop.f32.mrf.mxu0
    %232 = vmatprep.mubr.f32.mxu0 %v96
    %233 = vmatmul.mubr.f32.gmra.mxu0 %v88
    %v234 = vpop.f32.mrf.mxu0
    %v235 = vadd.f32 0.0, %v234
    %v236 = vpop.f32.mrf.mxu0
    %237 = vdwg.mxu0
    %238 = vmatprep.subr.mxu0 0.0
    %239 = vmatpush1.msra.mxu0 %v152
    %240 = vmatprep.subr.mxu0 0.0
    %241 = vmatpush1.msra.mxu0 %v151
    %242 = vmatprep.subr.mxu0 0.0
    %243 = vmatpush1.msra.mxu0 %v150
    %244 = vmatprep.subr.mxu0 0.0
    %245 = vmatpush1.msra.mxu0 %v149
    %246 = vmatprep.subr.mxu0 0.0
    %247 = vmatpush1.msra.mxu0 %v148
    %248 = vmatprep.subr.mxu0 0.0
    %249 = vmatpush1.msra.mxu0 %v147
    %250 = vmatprep.subr.mxu0 0.0
    %251 = vmatpush1.msra.mxu0 %v146
    %252 = vmatprep.subr.mxu0 0.0
    %253 = vmatpush1.msra.mxu0 %v145
    %254 = vmatprep.subr.mxu0 0.0
    %255 = vmatpush1.msra.mxu0 %v144
    %256 = vmatprep.subr.mxu0 0.0
    %257 = vmatpush1.msra.mxu0 %v143
    %258 = vmatprep.subr.mxu0 0.0
    %259 = vmatpush1.msra.mxu0 %v142
    %260 = vmatprep.subr.mxu0 0.0
    %261 = vmatpush1.msra.mxu0 %v141
    %262 = vmatprep.subr.mxu0 0.0
    %263 = vmatpush1.msra.mxu0 %v140
    %264 = vmatprep.subr.mxu0 0.0
    %265 = vmatpush1.msra.mxu0 %v139
    %266 = vmatprep.subr.mxu0 0.0
    %267 = vmatpush1.msra.mxu0 %v138
    %268 = vmatprep.subr.mxu0 0.0
    %269 = vmatpush1.msra.mxu0 %v137
    %270 = vmatprep.subr.mxu0 0.0
    %271 = vmatpush2.msra.mxu0 0.0
    %272 = vmatprep.subr.mxu0 0.0
    %273 = vmatpush2.msra.mxu0 0.0
    %274 = vmatprep.subr.mxu0 0.0
    %275 = vmatpush2.msra.mxu0 0.0
    %276 = vmatprep.subr.mxu0 0.0
    %277 = vmatpush2.msra.mxu0 0.0
    %278 = vmatprep.subr.mxu0 0.0
    %279 = vmatpush2.msra.mxu0 0.0
    %280 = vmatprep.subr.mxu0 0.0
    %281 = vmatpush2.msra.mxu0 0.0
    %282 = vmatprep.subr.mxu0 0.0
    %283 = vmatpush2.msra.mxu0 0.0
    %284 = vmatprep.subr.mxu0 0.0
    %285 = vmatpush2.msra.mxu0 0.0
    %286 = vmatprep.subr.mxu0 0.0
    %287 = vmatpush2.msra.mxu0 0.0
    %288 = vmatprep.subr.mxu0 0.0
    %289 = vmatpush2.msra.mxu0 0.0
    %290 = vmatprep.subr.mxu0 0.0
    %291 = vmatpush2.msra.mxu0 0.0
    %292 = vmatprep.subr.mxu0 0.0
    %293 = vmatpush2.msra.mxu0 0.0
    %294 = vmatprep.subr.mxu0 0.0
    %295 = vmatpush2.msra.mxu0 0.0
    %296 = vmatprep.subr.mxu0 0.0
    %297 = vmatpush2.msra.mxu0 0.0
    %298 = vmatprep.subr.mxu0 0.0
    %299 = vmatpush2.msra.mxu0 0.0
    %300 = vmatprep.subr.mxu0 0.0
    %301 = vmatpush2.msra.mxu0 0.0
    %302 = vmatprep.mubr.f32.mxu0 0.0
    %303 = vmatmul.mubr.f32.gmra.mxu0 %v98
    %v304 = vpop.f32.mrf.mxu0
    %v305 = vadd.f32 %v220, %v304
    %v306 = vpop.f32.mrf.mxu0
    %307 = vmatprep.mubr.f32.mxu0 0.0
    %308 = vmatmul.mubr.f32.gmra.mxu0 %v100
    %v309 = vpop.f32.mrf.mxu0
    %v310 = vadd.f32 %v225, %v309
    %v311 = vpop.f32.mrf.mxu0
    %312 = vmatprep.mubr.f32.mxu0 0.0
    %313 = vmatmul.mubr.f32.gmra.mxu0 %v102
    %v314 = vpop.f32.mrf.mxu0
    %v315 = vadd.f32 %v230, %v314
    %v316 = vpop.f32.mrf.mxu0
    %317 = vmatprep.mubr.f32.mxu0 0.0
    %318 = vmatmul.mubr.f32.gmra.mxu0 %v104
    %v319 = vpop.f32.mrf.mxu0
    %v320 = vadd.f32 %v235, %v319
    %v321 = vpop.f32.mrf.mxu0
    %322 = vdwg.mxu0
    %v323 = vadd.f32 %v305, %v310
    %v324 = vadd.f32 %v323, %v315
    %vm325 = vcmask 1046528
    %v326 = vsel %vm325, %v320, 0.0
    %v327 = vadd.f32 %v324, %v326
    %v328 = vrot.slane %v327, 4
    %v329 = vadd.f32 %v327, %v328
    %v330 = vrot.slane %v329, 2
    %v331 = vadd.f32 %v329, %v330
    %v332 = vrot.slane %v331, 1
    %v333 = vadd.f32 %v331, %v332
    %s334 = scalar_lea.vmem %s0, 64
    %v335 = vld [vmem:[%s334] ss:$2 sm:$0xff]
    %s336 = scalar_lea.vmem %s0, 80
    %v337 = vld [vmem:[%s336] ss:$2 sm:$0xff]
    %s338 = scalar_lea.vmem %s0, 96
    %v339 = vld [vmem:[%s338] ss:$2 sm:$0xff]
    %s340 = scalar_lea.vmem %s0, 112
    %v341 = vld [vmem:[%s340] ss:$2 sm:$0x7f]
    %s342 = scalar_lea.vmem %s0, 65
    %v343 = vld [vmem:[%s342] ss:$2 sm:$0xff]
    %s344 = scalar_lea.vmem %s0, 81
    %v345 = vld [vmem:[%s344] ss:$2 sm:$0xff]
    %s346 = scalar_lea.vmem %s0, 97
    %v347 = vld [vmem:[%s346] ss:$2 sm:$0xff]
    %s348 = scalar_lea.vmem %s0, 113
    %v349 = vld [vmem:[%s348] ss:$2 sm:$0x7f]
    %s350 = scalar_lea.vmem %s0, 66
    %v351 = vld [vmem:[%s350] ss:$2 sm:$0xff]
    %s352 = scalar_lea.vmem %s0, 82
    %v353 = vld [vmem:[%s352] ss:$2 sm:$0xff]
    %s354 = scalar_lea.vmem %s0, 98
    %v355 = vld [vmem:[%s354] ss:$2 sm:$0xff]
    %s356 = scalar_lea.vmem %s0, 114
    %v357 = vld [vmem:[%s356] ss:$2 sm:$0x7f]
    %358 = vmatprep.subr.mxu0 0.0
    %359 = vmatpush1.msra.mxu0 %v120
    %360 = vmatprep.subr.mxu0 0.0
    %361 = vmatpush1.msra.mxu0 %v119
    %362 = vmatprep.subr.mxu0 0.0
    %363 = vmatpush1.msra.mxu0 %v118
    %364 = vmatprep.subr.mxu0 0.0
    %365 = vmatpush1.msra.mxu0 %v117
    %366 = vmatprep.subr.mxu0 0.0
    %367 = vmatpush1.msra.mxu0 %v116
    %368 = vmatprep.subr.mxu0 0.0
    %369 = vmatpush1.msra.mxu0 %v115
    %370 = vmatprep.subr.mxu0 0.0
    %371 = vmatpush1.msra.mxu0 %v114
    %372 = vmatprep.subr.mxu0 0.0
    %373 = vmatpush1.msra.mxu0 %v113
    %374 = vmatprep.subr.mxu0 0.0
    %375 = vmatpush1.msra.mxu0 %v112
    %376 = vmatprep.subr.mxu0 0.0
    %377 = vmatpush1.msra.mxu0 %v111
    %378 = vmatprep.subr.mxu0 0.0
    %379 = vmatpush1.msra.mxu0 %v110
    %380 = vmatprep.subr.mxu0 0.0
    %381 = vmatpush1.msra.mxu0 %v109
    %382 = vmatprep.subr.mxu0 0.0
    %383 = vmatpush1.msra.mxu0 %v108
    %384 = vmatprep.subr.mxu0 0.0
    %385 = vmatpush1.msra.mxu0 %v107
    %386 = vmatprep.subr.mxu0 0.0
    %387 = vmatpush1.msra.mxu0 %v106
    %388 = vmatprep.subr.mxu0 0.0
    %389 = vmatpush1.msra.mxu0 %v105
    %390 = vmatprep.subr.mxu0 0.0
    %391 = vmatpush2.msra.mxu0 %v136
    %392 = vmatprep.subr.mxu0 0.0
    %393 = vmatpush2.msra.mxu0 %v135
    %394 = vmatprep.subr.mxu0 0.0
    %395 = vmatpush2.msra.mxu0 %v134
    %396 = vmatprep.subr.mxu0 0.0
    %397 = vmatpush2.msra.mxu0 %v133
    %398 = vmatprep.subr.mxu0 0.0
    %399 = vmatpush2.msra.mxu0 %v132
    %400 = vmatprep.subr.mxu0 0.0
    %401 = vmatpush2.msra.mxu0 %v131
    %402 = vmatprep.subr.mxu0 0.0
    %403 = vmatpush2.msra.mxu0 %v130
    %404 = vmatprep.subr.mxu0 0.0
    %405 = vmatpush2.msra.mxu0 %v129
    %406 = vmatprep.subr.mxu0 0.0
    %407 = vmatpush2.msra.mxu0 %v128
    %408 = vmatprep.subr.mxu0 0.0
    %409 = vmatpush2.msra.mxu0 %v127
    %410 = vmatprep.subr.mxu0 0.0
    %411 = vmatpush2.msra.mxu0 %v126
    %412 = vmatprep.subr.mxu0 0.0
    %413 = vmatpush2.msra.mxu0 %v125
    %414 = vmatprep.subr.mxu0 0.0
    %415 = vmatpush2.msra.mxu0 %v124
    %416 = vmatprep.subr.mxu0 0.0
    %417 = vmatpush2.msra.mxu0 %v123
    %418 = vmatprep.subr.mxu0 0.0
    %419 = vmatpush2.msra.mxu0 %v122
    %420 = vmatprep.subr.mxu0 0.0
    %421 = vmatpush2.msra.mxu0 %v121
    %422 = vmatprep.mubr.f32.mxu0 %v343
    %423 = vmatmul.mubr.f32.gmra.mxu0 %v335
    %v424 = vpop.f32.mrf.mxu0
    %v425 = vadd.f32 0.0, %v424
    %v426 = vpop.f32.mrf.mxu0
    %427 = vmatprep.mubr.f32.mxu0 %v345
    %428 = vmatmul.mubr.f32.gmra.mxu0 %v337
    %v429 = vpop.f32.mrf.mxu0
    %v430 = vadd.f32 0.0, %v429
    %v431 = vpop.f32.mrf.mxu0
    %432 = vmatprep.mubr.f32.mxu0 %v347
    %433 = vmatmul.mubr.f32.gmra.mxu0 %v339
    %v434 = vpop.f32.mrf.mxu0
    %v435 = vadd.f32 0.0, %v434
    %v436 = vpop.f32.mrf.mxu0
    %437 = vmatprep.mubr.f32.mxu0 %v349
    %438 = vmatmul.mubr.f32.gmra.mxu0 %v341
    %v439 = vpop.f32.mrf.mxu0
    %v440 = vadd.f32 0.0, %v439
    %v441 = vpop.f32.mrf.mxu0
    %442 = vdwg.mxu0
    %443 = vmatprep.subr.mxu0 0.0
    %444 = vmatpush1.msra.mxu0 %v152
    %445 = vmatprep.subr.mxu0 0.0
    %446 = vmatpush1.msra.mxu0 %v151
    %447 = vmatprep.subr.mxu0 0.0
    %448 = vmatpush1.msra.mxu0 %v150
    %449 = vmatprep.subr.mxu0 0.0
    %450 = vmatpush1.msra.mxu0 %v149
    %451 = vmatprep.subr.mxu0 0.0
    %452 = vmatpush1.msra.mxu0 %v148
    %453 = vmatprep.subr.mxu0 0.0
    %454 = vmatpush1.msra.mxu0 %v147
    %455 = vmatprep.subr.mxu0 0.0
    %456 = vmatpush1.msra.mxu0 %v146
    %457 = vmatprep.subr.mxu0 0.0
    %458 = vmatpush1.msra.mxu0 %v145
    %459 = vmatprep.subr.mxu0 0.0
    %460 = vmatpush1.msra.mxu0 %v144
    %461 = vmatprep.subr.mxu0 0.0
    %462 = vmatpush1.msra.mxu0 %v143
    %463 = vmatprep.subr.mxu0 0.0
    %464 = vmatpush1.msra.mxu0 %v142
    %465 = vmatprep.subr.mxu0 0.0
    %466 = vmatpush1.msra.mxu0 %v141
    %467 = vmatprep.subr.mxu0 0.0
    %468 = vmatpush1.msra.mxu0 %v140
    %469 = vmatprep.subr.mxu0 0.0
    %470 = vmatpush1.msra.mxu0 %v139
    %471 = vmatprep.subr.mxu0 0.0
    %472 = vmatpush1.msra.mxu0 %v138
    %473 = vmatprep.subr.mxu0 0.0
    %474 = vmatpush1.msra.mxu0 %v137
    %475 = vmatprep.subr.mxu0 0.0
    %476 = vmatpush2.msra.mxu0 0.0
    %477 = vmatprep.subr.mxu0 0.0
    %478 = vmatpush2.msra.mxu0 0.0
    %479 = vmatprep.subr.mxu0 0.0
    %480 = vmatpush2.msra.mxu0 0.0
    %481 = vmatprep.subr.mxu0 0.0
    %482 = vmatpush2.msra.mxu0 0.0
    %483 = vmatprep.subr.mxu0 0.0
    %484 = vmatpush2.msra.mxu0 0.0
    %485 = vmatprep.subr.mxu0 0.0
    %486 = vmatpush2.msra.mxu0 0.0
    %487 = vmatprep.subr.mxu0 0.0
    %488 = vmatpush2.msra.mxu0 0.0
    %489 = vmatprep.subr.mxu0 0.0
    %490 = vmatpush2.msra.mxu0 0.0
    %491 = vmatprep.subr.mxu0 0.0
    %492 = vmatpush2.msra.mxu0 0.0
    %493 = vmatprep.subr.mxu0 0.0
    %494 = vmatpush2.msra.mxu0 0.0
    %495 = vmatprep.subr.mxu0 0.0
    %496 = vmatpush2.msra.mxu0 0.0
    %497 = vmatprep.subr.mxu0 0.0
    %498 = vmatpush2.msra.mxu0 0.0
    %499 = vmatprep.subr.mxu0 0.0
    %500 = vmatpush2.msra.mxu0 0.0
    %501 = vmatprep.subr.mxu0 0.0
    %502 = vmatpush2.msra.mxu0 0.0
    %503 = vmatprep.subr.mxu0 0.0
    %504 = vmatpush2.msra.mxu0 0.0
    %505 = vmatprep.subr.mxu0 0.0
    %506 = vmatpush2.msra.mxu0 0.0
    %507 = vmatprep.mubr.f32.mxu0 0.0
    %508 = vmatmul.mubr.f32.gmra.mxu0 %v351
    %v509 = vpop.f32.mrf.mxu0
    %v510 = vadd.f32 %v425, %v509
    %v511 = vpop.f32.mrf.mxu0
    %512 = vmatprep.mubr.f32.mxu0 0.0
    %513 = vmatmul.mubr.f32.gmra.mxu0 %v353
    %v514 = vpop.f32.mrf.mxu0
    %v515 = vadd.f32 %v430, %v514
    %v516 = vpop.f32.mrf.mxu0
    %517 = vmatprep.mubr.f32.mxu0 0.0
    %518 = vmatmul.mubr.f32.gmra.mxu0 %v355
    %v519 = vpop.f32.mrf.mxu0
    %v520 = vadd.f32 %v435, %v519
    %v521 = vpop.f32.mrf.mxu0
    %522 = vmatprep.mubr.f32.mxu0 0.0
    %523 = vmatmul.mubr.f32.gmra.mxu0 %v357
    %v524 = vpop.f32.mrf.mxu0
    %v525 = vadd.f32 %v440, %v524
    %v526 = vpop.f32.mrf.mxu0
    %527 = vdwg.mxu0
    %v528 = vadd.f32 %v510, %v515
    %v529 = vadd.f32 %v528, %v520
    %v530 = vsel %vm325, %v525, 0.0
    %v531 = vadd.f32 %v529, %v530
    %v532 = vrot.slane %v531, 4
    %v533 = vadd.f32 %v531, %v532
    %v534 = vrot.slane %v533, 2
    %v535 = vadd.f32 %v533, %v534
    %v536 = vrot.slane %v535, 1
    %v537 = vadd.f32 %v535, %v536
    %v538 = vadd.f32 %v333, %v537
    %v539 = vmul.f32 %v538, 0.016129032
    %v540 = vsub.f32 %v305, %v539
    %v541 = vsub.f32 %v310, %v539
    %v542 = vsub.f32 %v315, %v539
    %v543 = vsub.f32 %v320, %v539
    %v544 = vsub.f32 %v510, %v539
    %v545 = vsub.f32 %v515, %v539
    %v546 = vsub.f32 %v520, %v539
    %v547 = vsub.f32 %v525, %v539
    %v548 = vmul.f32 %v540, %v540
    %v549 = vmul.f32 %v541, %v541
    %v550 = vmul.f32 %v542, %v542
    %v551 = vmul.f32 %v543, %v543
    %v552 = vadd.f32 %v548, %v549
    %v553 = vadd.f32 %v552, %v550
    %v554 = vsel %vm325, %v551, 0.0
    %v555 = vadd.f32 %v553, %v554
    %v556 = vrot.slane %v555, 4
    %v557 = vadd.f32 %v555, %v556
    %v558 = vrot.slane %v557, 2
    %v559 = vadd.f32 %v557, %v558
    %v560 = vrot.slane %v559, 1
    %v561 = vadd.f32 %v559, %v560
    %v562 = vmul.f32 %v544, %v544
    %v563 = vmul.f32 %v545, %v545
    %v564 = vmul.f32 %v546, %v546
    %v565 = vmul.f32 %v547, %v547
    %v566 = vadd.f32 %v562, %v563
    %v567 = vadd.f32 %v566, %v564
    %v568 = vsel %vm325, %v565, 0.0
    %v569 = vadd.f32 %v567, %v568
    %v570 = vrot.slane %v569, 4
    %v571 = vadd.f32 %v569, %v570
    %v572 = vrot.slane %v571, 2
    %v573 = vadd.f32 %v571, %v572
    %v574 = vrot.slane %v573, 1
    %v575 = vadd.f32 %v573, %v574
    %v576 = vadd.f32 %v561, %v575
    %v577 = vmul.f32 %v576, 0.016129032
    %v578 = vld [vmem:[%s5] sm:$0x1]
    %v579 = vadd.f32 %v577, 1e-05
    %v580 = vrsqrt.pop %v579
    %v581 = vmul.f32 %v578, %v580
    %v582 = vld [vmem:[%s6] sm:$0x1]
    %v584 = vlaneseq
    %v585 = vshrl.u32 %v584, 7
    %v586 = vsub.s32 0, %v585
    %v587 = vrot.slane %v581, %v586
    %v589 = vmul.f32 %v540, %v587
    %v590 = vmul.f32 %v541, %v587
    %v591 = vmul.f32 %v542, %v587
    %v592 = vmul.f32 %v543, %v587
    %v594 = vlaneseq
    %v595 = vshrl.u32 %v594, 7
    %v596 = vsub.s32 0, %v595
    %v597 = vrot.slane %v582, %v596
    %v599 = vadd.f32 %v589, %v597
    %v600 = vadd.f32 %v590, %v597
    %v601 = vadd.f32 %v591, %v597
    %v602 = vadd.f32 %v592, %v597
    %vm603 = vcmp.ge.f32.partialorder %v599, 0.0
    %vm604 = vcmp.ge.f32.partialorder %v600, 0.0
    %vm605 = vcmp.ge.f32.partialorder %v601, 0.0
    %vm606 = vcmp.ge.f32.partialorder %v602, 0.0
    %v607 = vmul.f32 %v599, 0.2
    %v608 = vmul.f32 %v600, 0.2
    %v609 = vmul.f32 %v601, 0.2
    %v610 = vmul.f32 %v602, 0.2
    %v611 = vsel %vm603, %v599, %v607
    %v612 = vsel %vm604, %v600, %v608
    %v613 = vsel %vm605, %v601, %v609
    %v614 = vsel %vm606, %v602, %v610
    %615 = vst [vmem:[#allocation2] sm:$0xff] %v611
    %616 = vst [vmem:[#allocation2 + $0x8] sm:$0xff] %v612
    %617 = vst [vmem:[#allocation2 + $0x10] sm:$0xff] %v613
    %618 = vst [vmem:[#allocation2 + $0x18] sm:$0x7f] %v614
    %v619 = vmul.f32 %v544, %v587
    %v620 = vmul.f32 %v545, %v587
    %v621 = vmul.f32 %v546, %v587
    %v622 = vmul.f32 %v547, %v587
    %v623 = vadd.f32 %v619, %v597
    %v624 = vadd.f32 %v620, %v597
    %v625 = vadd.f32 %v621, %v597
    %v626 = vadd.f32 %v622, %v597
    %vm627 = vcmp.ge.f32.partialorder %v623, 0.0
    %vm628 = vcmp.ge.f32.partialorder %v624, 0.0
    %vm629 = vcmp.ge.f32.partialorder %v625, 0.0
    %vm630 = vcmp.ge.f32.partialorder %v626, 0.0
    %v631 = vmul.f32 %v623, 0.2
    %v632 = vmul.f32 %v624, 0.2
    %v633 = vmul.f32 %v625, 0.2
    %v634 = vmul.f32 %v626, 0.2
    %v635 = vsel %vm627, %v623, %v631
    %v636 = vsel %vm628, %v624, %v632
    %v637 = vsel %vm629, %v625, %v633
    %v638 = vsel %vm630, %v626, %v634
    %639 = vst [vmem:[#allocation2 + $0x20] sm:$0xff] %v635
    %640 = vst [vmem:[#allocation2 + $0x28] sm:$0xff] %v636
    %641 = vst [vmem:[#allocation2 + $0x30] sm:$0xff] %v637
    %642 = vst [vmem:[#allocation2 + $0x38] sm:$0x7f] %v638
    %v643 = vld [vmem:[#allocation2] ss:$2 sm:$0xff]
    %s644 = scalar_lea.vmem [#allocation2], 16
    %v645 = vld [vmem:[%s644] ss:$2 sm:$0x7f]
    %s646 = scalar_lea.vmem [#allocation2], 1
    %v647 = vld [vmem:[%s646] ss:$2 sm:$0xff]
    %s648 = scalar_lea.vmem [#allocation2], 17
    %v649 = vld [vmem:[%s648] ss:$2 sm:$0x7f]
    %s650 = scalar_lea.vmem [#allocation2], 2
    %v651 = vld [vmem:[%s650] ss:$2 sm:$0xff]
    %s652 = scalar_lea.vmem [#allocation2], 18
    %v653 = vld [vmem:[%s652] ss:$2 sm:$0x7f]
    %v654 = vld [vmem:[#allocation5] sm:$0xff]
    %v655 = vld [vmem:[#allocation5 + $0x8] sm:$0xff]
    %v656 = vld [vmem:[#allocation5 + $0x10] sm:$0xff]
    %v657 = vld [vmem:[#allocation5 + $0x18] sm:$0xff]
    %v658 = vld [vmem:[#allocation5 + $0x20] sm:$0xff]
    %v659 = vld [vmem:[#allocation5 + $0x28] sm:$0xff]
    %v660 = vld [vmem:[#allocation5 + $0x30] sm:$0xff]
    %v661 = vld [vmem:[#allocation5 + $0x38] sm:$0xff]
    %v662 = vld [vmem:[#allocation5 + $0x40] sm:$0xff]
    %v663 = vld [vmem:[#allocation5 + $0x48] sm:$0xff]
    %v664 = vld [vmem:[#allocation5 + $0x50] sm:$0xff]
    %v665 = vld [vmem:[#allocation5 + $0x58] sm:$0xff]
    %v666 = vld [vmem:[#allocation5 + $0x60] sm:$0xff]
    %v667 = vld [vmem:[#allocation5 + $0x68] sm:$0xff]
    %v668 = vld [vmem:[#allocation5 + $0x70] sm:$0xff]
    %v669 = vld [vmem:[#allocation5 + $0x78] sm:$0xff]
    %v670 = vld [vmem:[#allocation5 + $0x80] sm:$0xff]
    %v671 = vld [vmem:[#allocation5 + $0x88] sm:$0xff]
    %v672 = vld [vmem:[#allocation5 + $0x90] sm:$0xff]
    %v673 = vld [vmem:[#allocation5 + $0x98] sm:$0xff]
    %v674 = vld [vmem:[#allocation5 + $0xa0] sm:$0xff]
    %v675 = vld [vmem:[#allocation5 + $0xa8] sm:$0xff]
    %v676 = vld [vmem:[#allocation5 + $0xb0] sm:$0xff]
    %v677 = vld [vmem:[#allocation5 + $0xb8] sm:$0xff]
    %v678 = vld [vmem:[#allocation5 + $0xc0] sm:$0xff]
    %v679 = vld [vmem:[#allocation5 + $0xc8] sm:$0xff]
    %v680 = vld [vmem:[#allocation5 + $0xd0] sm:$0xff]
    %v681 = vld [vmem:[#allocation5 + $0xd8] sm:$0xff]
    %v682 = vld [vmem:[#allocation5 + $0xe0] sm:$0xff]
    %v683 = vld [vmem:[#allocation5 + $0xe8] sm:$0xff]
    %v684 = vld [vmem:[#allocation5 + $0xf0] sm:$0xff]
    %v685 = vld [vmem:[#allocation5 + $0xf8] sm:$0xff]
    %v686 = vld [vmem:[#allocation5 + $0x100] sm:$0xff]
    %v687 = vld [vmem:[#allocation5 + $0x108] sm:$0xff]
    %v688 = vld [vmem:[#allocation5 + $0x110] sm:$0xff]
    %v689 = vld [vmem:[#allocation5 + $0x118] sm:$0xff]
    %v690 = vld [vmem:[#allocation5 + $0x120] sm:$0xff]
    %v691 = vld [vmem:[#allocation5 + $0x128] sm:$0xff]
    %v692 = vld [vmem:[#allocation5 + $0x130] sm:$0xff]
    %v693 = vld [vmem:[#allocation5 + $0x138] sm:$0xff]
    %v694 = vld [vmem:[#allocation5 + $0x140] sm:$0xff]
    %v695 = vld [vmem:[#allocation5 + $0x148] sm:$0xff]
    %v696 = vld [vmem:[#allocation5 + $0x150] sm:$0xff]
    %v697 = vld [vmem:[#allocation5 + $0x158] sm:$0xff]
    %v698 = vld [vmem:[#allocation5 + $0x160] sm:$0xff]
    %v699 = vld [vmem:[#allocation5 + $0x168] sm:$0xff]
    %v700 = vld [vmem:[#allocation5 + $0x170] sm:$0xff]
    %v701 = vld [vmem:[#allocation5 + $0x178] sm:$0xff]
    %702 = vmatprep.subr.mxu0 0.0
    %703 = vmatpush1.msra.mxu0 %v669
    %704 = vmatprep.subr.mxu0 0.0
    %705 = vmatpush1.msra.mxu0 %v668
    %706 = vmatprep.subr.mxu0 0.0
    %707 = vmatpush1.msra.mxu0 %v667
    %708 = vmatprep.subr.mxu0 0.0
    %709 = vmatpush1.msra.mxu0 %v666
    %710 = vmatprep.subr.mxu0 0.0
    %711 = vmatpush1.msra.mxu0 %v665
    %712 = vmatprep.subr.mxu0 0.0
    %713 = vmatpush1.msra.mxu0 %v664
    %714 = vmatprep.subr.mxu0 0.0
    %715 = vmatpush1.msra.mxu0 %v663
    %716 = vmatprep.subr.mxu0 0.0
    %717 = vmatpush1.msra.mxu0 %v662
    %718 = vmatprep.subr.mxu0 0.0
    %719 = vmatpush1.msra.mxu0 %v661
    %720 = vmatprep.subr.mxu0 0.0
    %721 = vmatpush1.msra.mxu0 %v660
    %722 = vmatprep.subr.mxu0 0.0
    %723 = vmatpush1.msra.mxu0 %v659
    %724 = vmatprep.subr.mxu0 0.0
    %725 = vmatpush1.msra.mxu0 %v658
    %726 = vmatprep.subr.mxu0 0.0
    %727 = vmatpush1.msra.mxu0 %v657
    %728 = vmatprep.subr.mxu0 0.0
    %729 = vmatpush1.msra.mxu0 %v656
    %730 = vmatprep.subr.mxu0 0.0
    %731 = vmatpush1.msra.mxu0 %v655
    %732 = vmatprep.subr.mxu0 0.0
    %733 = vmatpush1.msra.mxu0 %v654
    %734 = vmatprep.subr.mxu0 0.0
    %735 = vmatpush2.msra.mxu0 %v685
    %736 = vmatprep.subr.mxu0 0.0
    %737 = vmatpush2.msra.mxu0 %v684
    %738 = vmatprep.subr.mxu0 0.0
    %739 = vmatpush2.msra.mxu0 %v683
    %740 = vmatprep.subr.mxu0 0.0
    %741 = vmatpush2.msra.mxu0 %v682
    %742 = vmatprep.subr.mxu0 0.0
    %743 = vmatpush2.msra.mxu0 %v681
    %744 = vmatprep.subr.mxu0 0.0
    %745 = vmatpush2.msra.mxu0 %v680
    %746 = vmatprep.subr.mxu0 0.0
    %747 = vmatpush2.msra.mxu0 %v679
    %748 = vmatprep.subr.mxu0 0.0
    %749 = vmatpush2.msra.mxu0 %v678
    %750 = vmatprep.subr.mxu0 0.0
    %751 = vmatpush2.msra.mxu0 %v677
    %752 = vmatprep.subr.mxu0 0.0
    %753 = vmatpush2.msra.mxu0 %v676
    %754 = vmatprep.subr.mxu0 0.0
    %755 = vmatpush2.msra.mxu0 %v675
    %756 = vmatprep.subr.mxu0 0.0
    %757 = vmatpush2.msra.mxu0 %v674
    %758 = vmatprep.subr.mxu0 0.0
    %759 = vmatpush2.msra.mxu0 %v673
    %760 = vmatprep.subr.mxu0 0.0
    %761 = vmatpush2.msra.mxu0 %v672
    %762 = vmatprep.subr.mxu0 0.0
    %763 = vmatpush2.msra.mxu0 %v671
    %764 = vmatprep.subr.mxu0 0.0
    %765 = vmatpush2.msra.mxu0 %v670
    %766 = vmatprep.mubr.f32.mxu0 %v647
    %767 = vmatmul.mubr.f32.gmra.mxu0 %v643
    %v768 = vpop.f32.mrf.mxu0
    %v769 = vadd.f32 0.0, %v768
    %v770 = vpop.f32.mrf.mxu0
    %771 = vmatprep.mubr.f32.mxu0 %v649
    %772 = vmatmul.mubr.f32.gmra.mxu0 %v645
    %v773 = vpop.f32.mrf.mxu0
    %v774 = vadd.f32 0.0, %v773
    %v775 = vpop.f32.mrf.mxu0
    %776 = vdwg.mxu0
    %777 = vmatprep.subr.mxu0 0.0
    %778 = vmatpush1.msra.mxu0 %v701
    %779 = vmatprep.subr.mxu0 0.0
    %780 = vmatpush1.msra.mxu0 %v700
    %781 = vmatprep.subr.mxu0 0.0
    %782 = vmatpush1.msra.mxu0 %v699
    %783 = vmatprep.subr.mxu0 0.0
    %784 = vmatpush1.msra.mxu0 %v698
    %785 = vmatprep.subr.mxu0 0.0
    %786 = vmatpush1.msra.mxu0 %v697
    %787 = vmatprep.subr.mxu0 0.0
    %788 = vmatpush1.msra.mxu0 %v696
    %789 = vmatprep.subr.mxu0 0.0
    %790 = vmatpush1.msra.mxu0 %v695
    %791 = vmatprep.subr.mxu0 0.0
    %792 = vmatpush1.msra.mxu0 %v694
    %793 = vmatprep.subr.mxu0 0.0
    %794 = vmatpush1.msra.mxu0 %v693
    %795 = vmatprep.subr.mxu0 0.0
    %796 = vmatpush1.msra.mxu0 %v692
    %797 = vmatprep.subr.mxu0 0.0
    %798 = vmatpush1.msra.mxu0 %v691
    %799 = vmatprep.subr.mxu0 0.0
    %800 = vmatpush1.msra.mxu0 %v690
    %801 = vmatprep.subr.mxu0 0.0
    %802 = vmatpush1.msra.mxu0 %v689
    %803 = vmatprep.subr.mxu0 0.0
    %804 = vmatpush1.msra.mxu0 %v688
    %805 = vmatprep.subr.mxu0 0.0
    %806 = vmatpush1.msra.mxu0 %v687
    %807 = vmatprep.subr.mxu0 0.0
    %808 = vmatpush1.msra.mxu0 %v686
    %809 = vmatprep.subr.mxu0 0.0
    %810 = vmatpush2.msra.mxu0 0.0
    %811 = vmatprep.subr.mxu0 0.0
    %812 = vmatpush2.msra.mxu0 0.0
    %813 = vmatprep.subr.mxu0 0.0
    %814 = vmatpush2.msra.mxu0 0.0
    %815 = vmatprep.subr.mxu0 0.0
    %816 = vmatpush2.msra.mxu0 0.0
    %817 = vmatprep.subr.mxu0 0.0
    %818 = vmatpush2.msra.mxu0 0.0
    %819 = vmatprep.subr.mxu0 0.0
    %820 = vmatpush2.msra.mxu0 0.0
    %821 = vmatprep.subr.mxu0 0.0
    %822 = vmatpush2.msra.mxu0 0.0
    %823 = vmatprep.subr.mxu0 0.0
    %824 = vmatpush2.msra.mxu0 0.0
    %825 = vmatprep.subr.mxu0 0.0
    %826 = vmatpush2.msra.mxu0 0.0
    %827 = vmatprep.subr.mxu0 0.0
    %828 = vmatpush2.msra.mxu0 0.0
    %829 = vmatprep.subr.mxu0 0.0
    %830 = vmatpush2.msra.mxu0 0.0
    %831 = vmatprep.subr.mxu0 0.0
    %832 = vmatpush2.msra.mxu0 0.0
    %833 = vmatprep.subr.mxu0 0.0
    %834 = vmatpush2.msra.mxu0 0.0
    %835 = vmatprep.subr.mxu0 0.0
    %836 = vmatpush2.msra.mxu0 0.0
    %837 = vmatprep.subr.mxu0 0.0
    %838 = vmatpush2.msra.mxu0 0.0
    %839 = vmatprep.subr.mxu0 0.0
    %840 = vmatpush2.msra.mxu0 0.0
    %841 = vmatprep.mubr.f32.mxu0 0.0
    %842 = vmatmul.mubr.f32.gmra.mxu0 %v651
    %v843 = vpop.f32.mrf.mxu0
    %v844 = vadd.f32 %v769, %v843
    %v845 = vpop.f32.mrf.mxu0
    %846 = vmatprep.mubr.f32.mxu0 0.0
    %847 = vmatmul.mubr.f32.gmra.mxu0 %v653
    %v848 = vpop.f32.mrf.mxu0
    %v849 = vadd.f32 %v774, %v848
    %v850 = vpop.f32.mrf.mxu0
    %851 = vdwg.mxu0
    %v852 = vsel %vm325, %v849, 0.0
    %v853 = vadd.f32 %v844, %v852
    %v854 = vrot.slane %v853, 4
    %v855 = vadd.f32 %v853, %v854
    %v856 = vrot.slane %v855, 2
    %v857 = vadd.f32 %v855, %v856
    %v858 = vrot.slane %v857, 1
    %v859 = vadd.f32 %v857, %v858
    %s860 = scalar_lea.vmem [#allocation2], 32
    %v861 = vld [vmem:[%s860] ss:$2 sm:$0xff]
    %s862 = scalar_lea.vmem [#allocation2], 48
    %v863 = vld [vmem:[%s862] ss:$2 sm:$0x7f]
    %s864 = scalar_lea.vmem [#allocation2], 33
    %v865 = vld [vmem:[%s864] ss:$2 sm:$0xff]
    %s866 = scalar_lea.vmem [#allocation2], 49
    %v867 = vld [vmem:[%s866] ss:$2 sm:$0x7f]
    %s868 = scalar_lea.vmem [#allocation2], 34
    %v869 = vld [vmem:[%s868] ss:$2 sm:$0xff]
    %s870 = scalar_lea.vmem [#allocation2], 50
    %v871 = vld [vmem:[%s870] ss:$2 sm:$0x7f]
    %872 = vmatprep.subr.mxu0 0.0
    %873 = vmatpush1.msra.mxu0 %v669
    %874 = vmatprep.subr.mxu0 0.0
    %875 = vmatpush1.msra.mxu0 %v668
    %876 = vmatprep.subr.mxu0 0.0
    %877 = vmatpush1.msra.mxu0 %v667
    %878 = vmatprep.subr.mxu0 0.0
    %879 = vmatpush1.msra.mxu0 %v666
    %880 = vmatprep.subr.mxu0 0.0
    %881 = vmatpush1.msra.mxu0 %v665
    %882 = vmatprep.subr.mxu0 0.0
    %883 = vmatpush1.msra.mxu0 %v664
    %884 = vmatprep.subr.mxu0 0.0
    %885 = vmatpush1.msra.mxu0 %v663
    %886 = vmatprep.subr.mxu0 0.0
    %887 = vmatpush1.msra.mxu0 %v662
    %888 = vmatprep.subr.mxu0 0.0
    %889 = vmatpush1.msra.mxu0 %v661
    %890 = vmatprep.subr.mxu0 0.0
    %891 = vmatpush1.msra.mxu0 %v660
    %892 = vmatprep.subr.mxu0 0.0
    %893 = vmatpush1.msra.mxu0 %v659
    %894 = vmatprep.subr.mxu0 0.0
    %895 = vmatpush1.msra.mxu0 %v658
    %896 = vmatprep.subr.mxu0 0.0
    %897 = vmatpush1.msra.mxu0 %v657
    %898 = vmatprep.subr.mxu0 0.0
    %899 = vmatpush1.msra.mxu0 %v656
    %900 = vmatprep.subr.mxu0 0.0
    %901 = vmatpush1.msra.mxu0 %v655
    %902 = vmatprep.subr.mxu0 0.0
    %903 = vmatpush1.msra.mxu0 %v654
    %904 = vmatprep.subr.mxu0 0.0
    %905 = vmatpush2.msra.mxu0 %v685
    %906 = vmatprep.subr.mxu0 0.0
    %907 = vmatpush2.msra.mxu0 %v684
    %908 = vmatprep.subr.mxu0 0.0
    %909 = vmatpush2.msra.mxu0 %v683
    %910 = vmatprep.subr.mxu0 0.0
    %911 = vmatpush2.msra.mxu0 %v682
    %912 = vmatprep.subr.mxu0 0.0
    %913 = vmatpush2.msra.mxu0 %v681
    %914 = vmatprep.subr.mxu0 0.0
    %915 = vmatpush2.msra.mxu0 %v680
    %916 = vmatprep.subr.mxu0 0.0
    %917 = vmatpush2.msra.mxu0 %v679
    %918 = vmatprep.subr.mxu0 0.0
    %919 = vmatpush2.msra.mxu0 %v678
    %920 = vmatprep.subr.mxu0 0.0
    %921 = vmatpush2.msra.mxu0 %v677
    %922 = vmatprep.subr.mxu0 0.0
    %923 = vmatpush2.msra.mxu0 %v676
    %924 = vmatprep.subr.mxu0 0.0
    %925 = vmatpush2.msra.mxu0 %v675
    %926 = vmatprep.subr.mxu0 0.0
    %927 = vmatpush2.msra.mxu0 %v674
    %928 = vmatprep.subr.mxu0 0.0
    %929 = vmatpush2.msra.mxu0 %v673
    %930 = vmatprep.subr.mxu0 0.0
    %931 = vmatpush2.msra.mxu0 %v672
    %932 = vmatprep.subr.mxu0 0.0
    %933 = vmatpush2.msra.mxu0 %v671
    %934 = vmatprep.subr.mxu0 0.0
    %935 = vmatpush2.msra.mxu0 %v670
    %936 = vmatprep.mubr.f32.mxu0 %v865
    %937 = vmatmul.mubr.f32.gmra.mxu0 %v861
    %v938 = vpop.f32.mrf.mxu0
    %v939 = vadd.f32 0.0, %v938
    %v940 = vpop.f32.mrf.mxu0
    %941 = vmatprep.mubr.f32.mxu0 %v867
    %942 = vmatmul.mubr.f32.gmra.mxu0 %v863
    %v943 = vpop.f32.mrf.mxu0
    %v944 = vadd.f32 0.0, %v943
    %v945 = vpop.f32.mrf.mxu0
    %946 = vdwg.mxu0
    %947 = vmatprep.subr.mxu0 0.0
    %948 = vmatpush1.msra.mxu0 %v701
    %949 = vmatprep.subr.mxu0 0.0
    %950 = vmatpush1.msra.mxu0 %v700
    %951 = vmatprep.subr.mxu0 0.0
    %952 = vmatpush1.msra.mxu0 %v699
    %953 = vmatprep.subr.mxu0 0.0
    %954 = vmatpush1.msra.mxu0 %v698
    %955 = vmatprep.subr.mxu0 0.0
    %956 = vmatpush1.msra.mxu0 %v697
    %957 = vmatprep.subr.mxu0 0.0
    %958 = vmatpush1.msra.mxu0 %v696
    %959 = vmatprep.subr.mxu0 0.0
    %960 = vmatpush1.msra.mxu0 %v695
    %961 = vmatprep.subr.mxu0 0.0
    %962 = vmatpush1.msra.mxu0 %v694
    %963 = vmatprep.subr.mxu0 0.0
    %964 = vmatpush1.msra.mxu0 %v693
    %965 = vmatprep.subr.mxu0 0.0
    %966 = vmatpush1.msra.mxu0 %v692
    %967 = vmatprep.subr.mxu0 0.0
    %968 = vmatpush1.msra.mxu0 %v691
    %969 = vmatprep.subr.mxu0 0.0
    %970 = vmatpush1.msra.mxu0 %v690
    %971 = vmatprep.subr.mxu0 0.0
    %972 = vmatpush1.msra.mxu0 %v689
    %973 = vmatprep.subr.mxu0 0.0
    %974 = vmatpush1.msra.mxu0 %v688
    %975 = vmatprep.subr.mxu0 0.0
    %976 = vmatpush1.msra.mxu0 %v687
    %977 = vmatprep.subr.mxu0 0.0
    %978 = vmatpush1.msra.mxu0 %v686
    %979 = vmatprep.subr.mxu0 0.0
    %980 = vmatpush2.msra.mxu0 0.0
    %981 = vmatprep.subr.mxu0 0.0
    %982 = vmatpush2.msra.mxu0 0.0
    %983 = vmatprep.subr.mxu0 0.0
    %984 = vmatpush2.msra.mxu0 0.0
    %985 = vmatprep.subr.mxu0 0.0
    %986 = vmatpush2.msra.mxu0 0.0
    %987 = vmatprep.subr.mxu0 0.0
    %988 = vmatpush2.msra.mxu0 0.0
    %989 = vmatprep.subr.mxu0 0.0
    %990 = vmatpush2.msra.mxu0 0.0
    %991 = vmatprep.subr.mxu0 0.0
    %992 = vmatpush2.msra.mxu0 0.0
    %993 = vmatprep.subr.mxu0 0.0
    %994 = vmatpush2.msra.mxu0 0.0
    %995 = vmatprep.subr.mxu0 0.0
    %996 = vmatpush2.msra.mxu0 0.0
    %997 = vmatprep.subr.mxu0 0.0
    %998 = vmatpush2.msra.mxu0 0.0
    %999 = vmatprep.subr.mxu0 0.0
    %1000 = vmatpush2.msra.mxu0 0.0
    %1001 = vmatprep.subr.mxu0 0.0
    %1002 = vmatpush2.msra.mxu0 0.0
    %1003 = vmatprep.subr.mxu0 0.0
    %1004 = vmatpush2.msra.mxu0 0.0
    %1005 = vmatprep.subr.mxu0 0.0
    %1006 = vmatpush2.msra.mxu0 0.0
    %1007 = vmatprep.subr.mxu0 0.0
    %1008 = vmatpush2.msra.mxu0 0.0
    %1009 = vmatprep.subr.mxu0 0.0
    %1010 = vmatpush2.msra.mxu0 0.0
    %1011 = vmatprep.mubr.f32.mxu0 0.0
    %1012 = vmatmul.mubr.f32.gmra.mxu0 %v869
    %v1013 = vpop.f32.mrf.mxu0
    %v1014 = vadd.f32 %v939, %v1013
    %v1015 = vpop.f32.mrf.mxu0
    %1016 = vmatprep.mubr.f32.mxu0 0.0
    %1017 = vmatmul.mubr.f32.gmra.mxu0 %v871
    %v1018 = vpop.f32.mrf.mxu0
    %v1019 = vadd.f32 %v944, %v1018
    %v1020 = vpop.f32.mrf.mxu0
    %1021 = vdwg.mxu0
    %v1022 = vsel %vm325, %v1019, 0.0
    %v1023 = vadd.f32 %v1014, %v1022
    %v1024 = vrot.slane %v1023, 4
    %v1025 = vadd.f32 %v1023, %v1024
    %v1026 = vrot.slane %v1025, 2
    %v1027 = vadd.f32 %v1025, %v1026
    %v1028 = vrot.slane %v1027, 1
    %v1029 = vadd.f32 %v1027, %v1028
    %v1030 = vadd.f32 %v859, %v1029
    %v1031 = vmul.f32 %v1030, 0.033333335
    %v1032 = vsub.f32 %v844, %v1031
    %v1033 = vsub.f32 %v849, %v1031
    %v1034 = vsub.f32 %v1014, %v1031
    %v1035 = vsub.f32 %v1019, %v1031
    %v1036 = vmul.f32 %v1032, %v1032
    %v1037 = vmul.f32 %v1033, %v1033
    %v1038 = vsel %vm325, %v1037, 0.0
    %v1039 = vadd.f32 %v1036, %v1038
    %v1040 = vrot.slane %v1039, 4
    %v1041 = vadd.f32 %v1039, %v1040
    %v1042 = vrot.slane %v1041, 2
    %v1043 = vadd.f32 %v1041, %v1042
    %v1044 = vrot.slane %v1043, 1
    %v1045 = vadd.f32 %v1043, %v1044
    %v1046 = vmul.f32 %v1034, %v1034
    %v1047 = vmul.f32 %v1035, %v1035
    %v1048 = vsel %vm325, %v1047, 0.0
    %v1049 = vadd.f32 %v1046, %v1048
    %v1050 = vrot.slane %v1049, 4
    %v1051 = vadd.f32 %v1049, %v1050
    %v1052 = vrot.slane %v1051, 2
    %v1053 = vadd.f32 %v1051, %v1052
    %v1054 = vrot.slane %v1053, 1
    %v1055 = vadd.f32 %v1053, %v1054
    %v1056 = vadd.f32 %v1045, %v1055
    %v1057 = vmul.f32 %v1056, 0.033333335
    %v1058 = vld [vmem:[%s7] sm:$0x1]
    %v1059 = vadd.f32 %v1057, 1e-05
    %v1060 = vrsqrt.pop %v1059
    %v1061 = vmul.f32 %v1058, %v1060
    %v1062 = vld [vmem:[%s8] sm:$0x1]
    %v1064 = vlaneseq
    %v1065 = vshrl.u32 %v1064, 7
    %v1066 = vsub.s32 0, %v1065
    %v1067 = vrot.slane %v1061, %v1066
    %v1069 = vmul.f32 %v1032, %v1067
    %v1070 = vmul.f32 %v1033, %v1067
    %v1072 = vlaneseq
    %v1073 = vshrl.u32 %v1072, 7
    %v1074 = vsub.s32 0, %v1073
    %v1075 = vrot.slane %v1062, %v1074
    %v1077 = vadd.f32 %v1069, %v1075
    %v1078 = vadd.f32 %v1070, %v1075
    %vm1079 = vcmp.ge.f32.partialorder %v1077, 0.0
    %vm1080 = vcmp.ge.f32.partialorder %v1078, 0.0
    %v1081 = vmul.f32 %v1077, 0.2
    %v1082 = vmul.f32 %v1078, 0.2
    %v1083 = vsel %vm1079, %v1077, %v1081
    %v1084 = vsel %vm1080, %v1078, %v1082
    %1085 = vst [vmem:[#allocation3] sm:$0xff] %v1083
    %1086 = vst [vmem:[#allocation3 + $0x8] sm:$0x7f] %v1084
    %v1087 = vmul.f32 %v1034, %v1067
    %v1088 = vmul.f32 %v1035, %v1067
    %v1089 = vadd.f32 %v1087, %v1075
    %v1090 = vadd.f32 %v1088, %v1075
    %vm1091 = vcmp.ge.f32.partialorder %v1089, 0.0
    %vm1092 = vcmp.ge.f32.partialorder %v1090, 0.0
    %v1093 = vmul.f32 %v1089, 0.2
    %v1094 = vmul.f32 %v1090, 0.2
    %v1095 = vsel %vm1091, %v1089, %v1093
    %v1096 = vsel %vm1092, %v1090, %v1094
    %1097 = vst [vmem:[#allocation3 + $0x10] sm:$0xff] %v1095
    %1098 = vst [vmem:[#allocation3 + $0x18] sm:$0x7f] %v1096
    %v1099 = vld [vmem:[#allocation3] ss:$2 sm:$0x7f]
    %s1100 = scalar_lea.vmem [#allocation3], 1
    %v1101 = vld [vmem:[%s1100] ss:$2 sm:$0x7f]
    %s1102 = scalar_lea.vmem [#allocation3], 2
    %v1103 = vld [vmem:[%s1102] ss:$2 sm:$0x7f]
    %v1104 = vld [vmem:[#allocation7] sm:$0xff]
    %v1105 = vld [vmem:[#allocation7 + $0x8] sm:$0xff]
    %v1106 = vld [vmem:[#allocation7 + $0x10] sm:$0xff]
    %v1107 = vld [vmem:[#allocation7 + $0x18] sm:$0xff]
    %v1108 = vld [vmem:[#allocation7 + $0x20] sm:$0xff]
    %v1109 = vld [vmem:[#allocation7 + $0x28] sm:$0xff]
    %v1110 = vld [vmem:[#allocation7 + $0x30] sm:$0xff]
    %v1111 = vld [vmem:[#allocation7 + $0x38] sm:$0xff]
    %v1112 = vld [vmem:[#allocation7 + $0x40] sm:$0xff]
    %v1113 = vld [vmem:[#allocation7 + $0x48] sm:$0xff]
    %v1114 = vld [vmem:[#allocation7 + $0x50] sm:$0xff]
    %v1115 = vld [vmem:[#allocation7 + $0x58] sm:$0xff]
    %v1116 = vld [vmem:[#allocation7 + $0x60] sm:$0xff]
    %v1117 = vld [vmem:[#allocation7 + $0x68] sm:$0xff]
    %v1118 = vld [vmem:[#allocation7 + $0x70] sm:$0xff]
    %v1119 = vld [vmem:[#allocation7 + $0x78] sm:$0xff]
    %v1120 = vld [vmem:[#allocation7 + $0x80] sm:$0xff]
    %v1121 = vld [vmem:[#allocation7 + $0x88] sm:$0xff]
    %v1122 = vld [vmem:[#allocation7 + $0x90] sm:$0xff]
    %v1123 = vld [vmem:[#allocation7 + $0x98] sm:$0xff]
    %v1124 = vld [vmem:[#allocation7 + $0xa0] sm:$0xff]
    %v1125 = vld [vmem:[#allocation7 + $0xa8] sm:$0xff]
    %v1126 = vld [vmem:[#allocation7 + $0xb0] sm:$0xff]
    %v1127 = vld [vmem:[#allocation7 + $0xb8] sm:$0xff]
    %v1128 = vld [vmem:[#allocation7 + $0xc0] sm:$0xff]
    %v1129 = vld [vmem:[#allocation7 + $0xc8] sm:$0xff]
    %v1130 = vld [vmem:[#allocation7 + $0xd0] sm:$0xff]
    %v1131 = vld [vmem:[#allocation7 + $0xd8] sm:$0xff]
    %v1132 = vld [vmem:[#allocation7 + $0xe0] sm:$0xff]
    %v1133 = vld [vmem:[#allocation7 + $0xe8] sm:$0xff]
    %v1134 = vld [vmem:[#allocation7 + $0xf0] sm:$0xff]
    %v1135 = vld [vmem:[#allocation7 + $0xf8] sm:$0xff]
    %v1136 = vld [vmem:[#allocation7 + $0x100] sm:$0xff]
    %v1137 = vld [vmem:[#allocation7 + $0x108] sm:$0xff]
    %v1138 = vld [vmem:[#allocation7 + $0x110] sm:$0xff]
    %v1139 = vld [vmem:[#allocation7 + $0x118] sm:$0xff]
    %v1140 = vld [vmem:[#allocation7 + $0x120] sm:$0xff]
    %v1141 = vld [vmem:[#allocation7 + $0x128] sm:$0xff]
    %v1142 = vld [vmem:[#allocation7 + $0x130] sm:$0xff]
    %v1143 = vld [vmem:[#allocation7 + $0x138] sm:$0xff]
    %v1144 = vld [vmem:[#allocation7 + $0x140] sm:$0xff]
    %v1145 = vld [vmem:[#allocation7 + $0x148] sm:$0xff]
    %v1146 = vld [vmem:[#allocation7 + $0x150] sm:$0xff]
    %v1147 = vld [vmem:[#allocation7 + $0x158] sm:$0xff]
    %v1148 = vld [vmem:[#allocation7 + $0x160] sm:$0xff]
    %v1149 = vld [vmem:[#allocation7 + $0x168] sm:$0xff]
    %v1150 = vld [vmem:[#allocation7 + $0x170] sm:$0xff]
    %v1151 = vld [vmem:[#allocation7 + $0x178] sm:$0xff]
    %1152 = vmatprep.subr.mxu0 0.0
    %1153 = vmatpush1.msra.mxu0 %v1119
    %1154 = vmatprep.subr.mxu0 0.0
    %1155 = vmatpush1.msra.mxu0 %v1118
    %1156 = vmatprep.subr.mxu0 0.0
    %1157 = vmatpush1.msra.mxu0 %v1117
    %1158 = vmatprep.subr.mxu0 0.0
    %1159 = vmatpush1.msra.mxu0 %v1116
    %1160 = vmatprep.subr.mxu0 0.0
    %1161 = vmatpush1.msra.mxu0 %v1115
    %1162 = vmatprep.subr.mxu0 0.0
    %1163 = vmatpush1.msra.mxu0 %v1114
    %1164 = vmatprep.subr.mxu0 0.0
    %1165 = vmatpush1.msra.mxu0 %v1113
    %1166 = vmatprep.subr.mxu0 0.0
    %1167 = vmatpush1.msra.mxu0 %v1112
    %1168 = vmatprep.subr.mxu0 0.0
    %1169 = vmatpush1.msra.mxu0 %v1111
    %1170 = vmatprep.subr.mxu0 0.0
    %1171 = vmatpush1.msra.mxu0 %v1110
    %1172 = vmatprep.subr.mxu0 0.0
    %1173 = vmatpush1.msra.mxu0 %v1109
    %1174 = vmatprep.subr.mxu0 0.0
    %1175 = vmatpush1.msra.mxu0 %v1108
    %1176 = vmatprep.subr.mxu0 0.0
    %1177 = vmatpush1.msra.mxu0 %v1107
    %1178 = vmatprep.subr.mxu0 0.0
    %1179 = vmatpush1.msra.mxu0 %v1106
    %1180 = vmatprep.subr.mxu0 0.0
    %1181 = vmatpush1.msra.mxu0 %v1105
    %1182 = vmatprep.subr.mxu0 0.0
    %1183 = vmatpush1.msra.mxu0 %v1104
    %1184 = vmatprep.subr.mxu0 0.0
    %1185 = vmatpush2.msra.mxu0 %v1135
    %1186 = vmatprep.subr.mxu0 0.0
    %1187 = vmatpush2.msra.mxu0 %v1134
    %1188 = vmatprep.subr.mxu0 0.0
    %1189 = vmatpush2.msra.mxu0 %v1133
    %1190 = vmatprep.subr.mxu0 0.0
    %1191 = vmatpush2.msra.mxu0 %v1132
    %1192 = vmatprep.subr.mxu0 0.0
    %1193 = vmatpush2.msra.mxu0 %v1131
    %1194 = vmatprep.subr.mxu0 0.0
    %1195 = vmatpush2.msra.mxu0 %v1130
    %1196 = vmatprep.subr.mxu0 0.0
    %1197 = vmatpush2.msra.mxu0 %v1129
    %1198 = vmatprep.subr.mxu0 0.0
    %1199 = vmatpush2.msra.mxu0 %v1128
    %1200 = vmatprep.subr.mxu0 0.0
    %1201 = vmatpush2.msra.mxu0 %v1127
    %1202 = vmatprep.subr.mxu0 0.0
    %1203 = vmatpush2.msra.mxu0 %v1126
    %1204 = vmatprep.subr.mxu0 0.0
    %1205 = vmatpush2.msra.mxu0 %v1125
    %1206 = vmatprep.subr.mxu0 0.0
    %1207 = vmatpush2.msra.mxu0 %v1124
    %1208 = vmatprep.subr.mxu0 0.0
    %1209 = vmatpush2.msra.mxu0 %v1123
    %1210 = vmatprep.subr.mxu0 0.0
    %1211 = vmatpush2.msra.mxu0 %v1122
    %1212 = vmatprep.subr.mxu0 0.0
    %1213 = vmatpush2.msra.mxu0 %v1121
    %1214 = vmatprep.subr.mxu0 0.0
    %1215 = vmatpush2.msra.mxu0 %v1120
    %1216 = vmatprep.mubr.f32.mxu0 %v1101
    %1217 = vmatmul.mubr.f32.gmra.mxu0 %v1099
    %v1218 = vpop.f32.mrf.mxu0
    %v1219 = vadd.f32 0.0, %v1218
    %v1220 = vpop.f32.mrf.mxu0
    %1221 = vdwg.mxu0
    %1222 = vmatprep.subr.mxu0 0.0
    %1223 = vmatpush1.msra.mxu0 %v1151
    %1224 = vmatprep.subr.mxu0 0.0
    %1225 = vmatpush1.msra.mxu0 %v1150
    %1226 = vmatprep.subr.mxu0 0.0
    %1227 = vmatpush1.msra.mxu0 %v1149
    %1228 = vmatprep.subr.mxu0 0.0
    %1229 = vmatpush1.msra.mxu0 %v1148
    %1230 = vmatprep.subr.mxu0 0.0
    %1231 = vmatpush1.msra.mxu0 %v1147
    %1232 = vmatprep.subr.mxu0 0.0
    %1233 = vmatpush1.msra.mxu0 %v1146
    %1234 = vmatprep.subr.mxu0 0.0
    %1235 = vmatpush1.msra.mxu0 %v1145
    %1236 = vmatprep.subr.mxu0 0.0
    %1237 = vmatpush1.msra.mxu0 %v1144
    %1238 = vmatprep.subr.mxu0 0.0
    %1239 = vmatpush1.msra.mxu0 %v1143
    %1240 = vmatprep.subr.mxu0 0.0
    %1241 = vmatpush1.msra.mxu0 %v1142
    %1242 = vmatprep.subr.mxu0 0.0
    %1243 = vmatpush1.msra.mxu0 %v1141
    %1244 = vmatprep.subr.mxu0 0.0
    %1245 = vmatpush1.msra.mxu0 %v1140
    %1246 = vmatprep.subr.mxu0 0.0
    %1247 = vmatpush1.msra.mxu0 %v1139
    %1248 = vmatprep.subr.mxu0 0.0
    %1249 = vmatpush1.msra.mxu0 %v1138
    %1250 = vmatprep.subr.mxu0 0.0
    %1251 = vmatpush1.msra.mxu0 %v1137
    %1252 = vmatprep.subr.mxu0 0.0
    %1253 = vmatpush1.msra.mxu0 %v1136
    %1254 = vmatprep.subr.mxu0 0.0
    %1255 = vmatpush2.msra.mxu0 0.0
    %1256 = vmatprep.subr.mxu0 0.0
    %1257 = vmatpush2.msra.mxu0 0.0
    %1258 = vmatprep.subr.mxu0 0.0
    %1259 = vmatpush2.msra.mxu0 0.0
    %1260 = vmatprep.subr.mxu0 0.0
    %1261 = vmatpush2.msra.mxu0 0.0
    %1262 = vmatprep.subr.mxu0 0.0
    %1263 = vmatpush2.msra.mxu0 0.0
    %1264 = vmatprep.subr.mxu0 0.0
    %1265 = vmatpush2.msra.mxu0 0.0
    %1266 = vmatprep.subr.mxu0 0.0
    %1267 = vmatpush2.msra.mxu0 0.0
    %1268 = vmatprep.subr.mxu0 0.0
    %1269 = vmatpush2.msra.mxu0 0.0
    %1270 = vmatprep.subr.mxu0 0.0
    %1271 = vmatpush2.msra.mxu0 0.0
    %1272 = vmatprep.subr.mxu0 0.0
    %1273 = vmatpush2.msra.mxu0 0.0
    %1274 = vmatprep.subr.mxu0 0.0
    %1275 = vmatpush2.msra.mxu0 0.0
    %1276 = vmatprep.subr.mxu0 0.0
    %1277 = vmatpush2.msra.mxu0 0.0
    %1278 = vmatprep.subr.mxu0 0.0
    %1279 = vmatpush2.msra.mxu0 0.0
    %1280 = vmatprep.subr.mxu0 0.0
    %1281 = vmatpush2.msra.mxu0 0.0
    %1282 = vmatprep.subr.mxu0 0.0
    %1283 = vmatpush2.msra.mxu0 0.0
    %1284 = vmatprep.subr.mxu0 0.0
    %1285 = vmatpush2.msra.mxu0 0.0
    %1286 = vmatprep.mubr.f32.mxu0 0.0
    %1287 = vmatmul.mubr.f32.gmra.mxu0 %v1103
    %v1288 = vpop.f32.mrf.mxu0
    %v1289 = vadd.f32 %v1219, %v1288
    %v1290 = vpop.f32.mrf.mxu0
    %1291 = vdwg.mxu0
    %v1292 = vsel %vm325, %v1289, 0.0
    %v1293 = vrot.slane %v1292, 4
    %v1294 = vadd.f32 %v1292, %v1293
    %v1295 = vrot.slane %v1294, 2
    %v1296 = vadd.f32 %v1294, %v1295
    %v1297 = vrot.slane %v1296, 1
    %v1298 = vadd.f32 %v1296, %v1297
    %s1299 = scalar_lea.vmem [#allocation3], 16
    %v1300 = vld [vmem:[%s1299] ss:$2 sm:$0x7f]
    %s1301 = scalar_lea.vmem [#allocation3], 17
    %v1302 = vld [vmem:[%s1301] ss:$2 sm:$0x7f]
    %s1303 = scalar_lea.vmem [#allocation3], 18
    %v1304 = vld [vmem:[%s1303] ss:$2 sm:$0x7f]
    %1305 = vmatprep.subr.mxu0 0.0
    %1306 = vmatpush1.msra.mxu0 %v1119
    %1307 = vmatprep.subr.mxu0 0.0
    %1308 = vmatpush1.msra.mxu0 %v1118
    %1309 = vmatprep.subr.mxu0 0.0
    %1310 = vmatpush1.msra.mxu0 %v1117
    %1311 = vmatprep.subr.mxu0 0.0
    %1312 = vmatpush1.msra.mxu0 %v1116
    %1313 = vmatprep.subr.mxu0 0.0
    %1314 = vmatpush1.msra.mxu0 %v1115
    %1315 = vmatprep.subr.mxu0 0.0
    %1316 = vmatpush1.msra.mxu0 %v1114
    %1317 = vmatprep.subr.mxu0 0.0
    %1318 = vmatpush1.msra.mxu0 %v1113
    %1319 = vmatprep.subr.mxu0 0.0
    %1320 = vmatpush1.msra.mxu0 %v1112
    %1321 = vmatprep.subr.mxu0 0.0
    %1322 = vmatpush1.msra.mxu0 %v1111
    %1323 = vmatprep.subr.mxu0 0.0
    %1324 = vmatpush1.msra.mxu0 %v1110
    %1325 = vmatprep.subr.mxu0 0.0
    %1326 = vmatpush1.msra.mxu0 %v1109
    %1327 = vmatprep.subr.mxu0 0.0
    %1328 = vmatpush1.msra.mxu0 %v1108
    %1329 = vmatprep.subr.mxu0 0.0
    %1330 = vmatpush1.msra.mxu0 %v1107
    %1331 = vmatprep.subr.mxu0 0.0
    %1332 = vmatpush1.msra.mxu0 %v1106
    %1333 = vmatprep.subr.mxu0 0.0
    %1334 = vmatpush1.msra.mxu0 %v1105
    %1335 = vmatprep.subr.mxu0 0.0
    %1336 = vmatpush1.msra.mxu0 %v1104
    %1337 = vmatprep.subr.mxu0 0.0
    %1338 = vmatpush2.msra.mxu0 %v1135
    %1339 = vmatprep.subr.mxu0 0.0
    %1340 = vmatpush2.msra.mxu0 %v1134
    %1341 = vmatprep.subr.mxu0 0.0
    %1342 = vmatpush2.msra.mxu0 %v1133
    %1343 = vmatprep.subr.mxu0 0.0
    %1344 = vmatpush2.msra.mxu0 %v1132
    %1345 = vmatprep.subr.mxu0 0.0
    %1346 = vmatpush2.msra.mxu0 %v1131
    %1347 = vmatprep.subr.mxu0 0.0
    %1348 = vmatpush2.msra.mxu0 %v1130
    %1349 = vmatprep.subr.mxu0 0.0
    %1350 = vmatpush2.msra.mxu0 %v1129
    %1351 = vmatprep.subr.mxu0 0.0
    %1352 = vmatpush2.msra.mxu0 %v1128
    %1353 = vmatprep.subr.mxu0 0.0
    %1354 = vmatpush2.msra.mxu0 %v1127
    %1355 = vmatprep.subr.mxu0 0.0
    %1356 = vmatpush2.msra.mxu0 %v1126
    %1357 = vmatprep.subr.mxu0 0.0
    %1358 = vmatpush2.msra.mxu0 %v1125
    %1359 = vmatprep.subr.mxu0 0.0
    %1360 = vmatpush2.msra.mxu0 %v1124
    %1361 = vmatprep.subr.mxu0 0.0
    %1362 = vmatpush2.msra.mxu0 %v1123
    %1363 = vmatprep.subr.mxu0 0.0
    %1364 = vmatpush2.msra.mxu0 %v1122
    %1365 = vmatprep.subr.mxu0 0.0
    %1366 = vmatpush2.msra.mxu0 %v1121
    %1367 = vmatprep.subr.mxu0 0.0
    %1368 = vmatpush2.msra.mxu0 %v1120
    %1369 = vmatprep.mubr.f32.mxu0 %v1302
    %1370 = vmatmul.mubr.f32.gmra.mxu0 %v1300
    %v1371 = vpop.f32.mrf.mxu0
    %v1372 = vadd.f32 0.0, %v1371
    %v1373 = vpop.f32.mrf.mxu0
    %1374 = vdwg.mxu0
    %1375 = vmatprep.subr.mxu0 0.0
    %1376 = vmatpush1.msra.mxu0 %v1151
    %1377 = vmatprep.subr.mxu0 0.0
    %1378 = vmatpush1.msra.mxu0 %v1150
    %1379 = vmatprep.subr.mxu0 0.0
    %1380 = vmatpush1.msra.mxu0 %v1149
    %1381 = vmatprep.subr.mxu0 0.0
    %1382 = vmatpush1.msra.mxu0 %v1148
    %1383 = vmatprep.subr.mxu0 0.0
    %1384 = vmatpush1.msra.mxu0 %v1147
    %1385 = vmatprep.subr.mxu0 0.0
    %1386 = vmatpush1.msra.mxu0 %v1146
    %1387 = vmatprep.subr.mxu0 0.0
    %1388 = vmatpush1.msra.mxu0 %v1145
    %1389 = vmatprep.subr.mxu0 0.0
    %1390 = vmatpush1.msra.mxu0 %v1144
    %1391 = vmatprep.subr.mxu0 0.0
    %1392 = vmatpush1.msra.mxu0 %v1143
    %1393 = vmatprep.subr.mxu0 0.0
    %1394 = vmatpush1.msra.mxu0 %v1142
    %1395 = vmatprep.subr.mxu0 0.0
    %1396 = vmatpush1.msra.mxu0 %v1141
    %1397 = vmatprep.subr.mxu0 0.0
    %1398 = vmatpush1.msra.mxu0 %v1140
    %1399 = vmatprep.subr.mxu0 0.0
    %1400 = vmatpush1.msra.mxu0 %v1139
    %1401 = vmatprep.subr.mxu0 0.0
    %1402 = vmatpush1.msra.mxu0 %v1138
    %1403 = vmatprep.subr.mxu0 0.0
    %1404 = vmatpush1.msra.mxu0 %v1137
    %1405 = vmatprep.subr.mxu0 0.0
    %1406 = vmatpush1.msra.mxu0 %v1136
    %1407 = vmatprep.subr.mxu0 0.0
    %1408 = vmatpush2.msra.mxu0 0.0
    %1409 = vmatprep.subr.mxu0 0.0
    %1410 = vmatpush2.msra.mxu0 0.0
    %1411 = vmatprep.subr.mxu0 0.0
    %1412 = vmatpush2.msra.mxu0 0.0
    %1413 = vmatprep.subr.mxu0 0.0
    %1414 = vmatpush2.msra.mxu0 0.0
    %1415 = vmatprep.subr.mxu0 0.0
    %1416 = vmatpush2.msra.mxu0 0.0
    %1417 = vmatprep.subr.mxu0 0.0
    %1418 = vmatpush2.msra.mxu0 0.0
    %1419 = vmatprep.subr.mxu0 0.0
    %1420 = vmatpush2.msra.mxu0 0.0
    %1421 = vmatprep.subr.mxu0 0.0
    %1422 = vmatpush2.msra.mxu0 0.0
    %1423 = vmatprep.subr.mxu0 0.0
    %1424 = vmatpush2.msra.mxu0 0.0
    %1425 = vmatprep.subr.mxu0 0.0
    %1426 = vmatpush2.msra.mxu0 0.0
    %1427 = vmatprep.subr.mxu0 0.0
    %1428 = vmatpush2.msra.mxu0 0.0
    %1429 = vmatprep.subr.mxu0 0.0
    %1430 = vmatpush2.msra.mxu0 0.0
    %1431 = vmatprep.subr.mxu0 0.0
    %1432 = vmatpush2.msra.mxu0 0.0
    %1433 = vmatprep.subr.mxu0 0.0
    %1434 = vmatpush2.msra.mxu0 0.0
    %1435 = vmatprep.subr.mxu0 0.0
    %1436 = vmatpush2.msra.mxu0 0.0
    %1437 = vmatprep.subr.mxu0 0.0
    %1438 = vmatpush2.msra.mxu0 0.0
    %1439 = vmatprep.mubr.f32.mxu0 0.0
    %1440 = vmatmul.mubr.f32.gmra.mxu0 %v1304
    %v1441 = vpop.f32.mrf.mxu0
    %v1442 = vadd.f32 %v1372, %v1441
    %v1443 = vpop.f32.mrf.mxu0
    %1444 = vdwg.mxu0
    %v1445 = vsel %vm325, %v1442, 0.0
    %v1446 = vrot.slane %v1445, 4
    %v1447 = vadd.f32 %v1445, %v1446
    %v1448 = vrot.slane %v1447, 2
    %v1449 = vadd.f32 %v1447, %v1448
    %v1450 = vrot.slane %v1449, 1
    %v1451 = vadd.f32 %v1449, %v1450
    %v1452 = vadd.f32 %v1298, %v1451
    %v1453 = vmul.f32 %v1452, 0.071428575
    %v1454 = vsub.f32 %v1289, %v1453
    %v1455 = vsub.f32 %v1442, %v1453
    %v1456 = vmul.f32 %v1454, %v1454
    %v1457 = vsel %vm325, %v1456, 0.0
    %v1458 = vrot.slane %v1457, 4
    %v1459 = vadd.f32 %v1457, %v1458
    %v1460 = vrot.slane %v1459, 2
    %v1461 = vadd.f32 %v1459, %v1460
    %v1462 = vrot.slane %v1461, 1
    %v1463 = vadd.f32 %v1461, %v1462
    %v1464 = vmul.f32 %v1455, %v1455
    %v1465 = vsel %vm325, %v1464, 0.0
    %v1466 = vrot.slane %v1465, 4
    %v1467 = vadd.f32 %v1465, %v1466
    %v1468 = vrot.slane %v1467, 2
    %v1469 = vadd.f32 %v1467, %v1468
    %v1470 = vrot.slane %v1469, 1
    %v1471 = vadd.f32 %v1469, %v1470
    %v1472 = vadd.f32 %v1463, %v1471
    %v1473 = vmul.f32 %v1472, 0.071428575
    %v1474 = vld [vmem:[%s9] sm:$0x1]
    %v1475 = vadd.f32 %v1473, 1e-05
    %v1476 = vrsqrt.pop %v1475
    %v1477 = vmul.f32 %v1474, %v1476
    %v1478 = vld [vmem:[%s10] sm:$0x1]
    %v1480 = vlaneseq
    %v1481 = vshrl.u32 %v1480, 7
    %v1482 = vsub.s32 0, %v1481
    %v1483 = vrot.slane %v1477, %v1482
    %v1485 = vmul.f32 %v1454, %v1483
    %v1487 = vlaneseq
    %v1488 = vshrl.u32 %v1487, 7
    %v1489 = vsub.s32 0, %v1488
    %v1490 = vrot.slane %v1478, %v1489
    %v1492 = vadd.f32 %v1485, %v1490
    %vm1493 = vcmp.ge.f32.partialorder %v1492, 0.0
    %v1494 = vmul.f32 %v1492, 0.2
    %v1495 = vsel %vm1493, %v1492, %v1494
    %1496 = vst [vmem:[#allocation4] sm:$0x7f] %v1495
    %v1497 = vmul.f32 %v1455, %v1483
    %v1498 = vadd.f32 %v1497, %v1490
    %vm1499 = vcmp.ge.f32.partialorder %v1498, 0.0
    %v1500 = vmul.f32 %v1498, 0.2
    %v1501 = vsel %vm1499, %v1498, %v1500
    %1502 = vst [vmem:[#allocation4 + $0x8] sm:$0x7f] %v1501
    %v1503 = vld [vmem:[#allocation4] ss:$2 sm:$0x7]
    %s1504 = scalar_lea.vmem [#allocation4], 1
    %v1505 = vld [vmem:[%s1504] ss:$2 sm:$0x7]
    %s1506 = scalar_lea.vmem [#allocation4], 2
    %v1507 = vld [vmem:[%s1506] ss:$2 sm:$0x7]
    %v1508 = vld [vmem:[#allocation9] sm:$0xff]
    %v1509 = vld [vmem:[#allocation9 + $0x8] sm:$0xff]
    %v1510 = vld [vmem:[#allocation9 + $0x10] sm:$0xff]
    %v1511 = vld [vmem:[#allocation9 + $0x18] sm:$0xff]
    %v1512 = vld [vmem:[#allocation9 + $0x20] sm:$0xff]
    %v1513 = vld [vmem:[#allocation9 + $0x28] sm:$0xff]
    %v1514 = vld [vmem:[#allocation9 + $0x30] sm:$0xff]
    %v1515 = vld [vmem:[#allocation9 + $0x38] sm:$0xff]
    %v1516 = vld [vmem:[#allocation9 + $0x40] sm:$0xff]
    %v1517 = vld [vmem:[#allocation9 + $0x48] sm:$0xff]
    %v1518 = vld [vmem:[#allocation9 + $0x50] sm:$0xff]
    %v1519 = vld [vmem:[#allocation9 + $0x58] sm:$0xff]
    %v1520 = vld [vmem:[#allocation9 + $0x60] sm:$0xff]
    %v1521 = vld [vmem:[#allocation9 + $0x68] sm:$0xff]
    %v1522 = vld [vmem:[#allocation9 + $0x70] sm:$0xff]
    %v1523 = vld [vmem:[#allocation9 + $0x78] sm:$0xff]
    %v1524 = vld [vmem:[#allocation9 + $0x80] sm:$0xff]
    %v1525 = vld [vmem:[#allocation9 + $0x88] sm:$0xff]
    %v1526 = vld [vmem:[#allocation9 + $0x90] sm:$0xff]
    %v1527 = vld [vmem:[#allocation9 + $0x98] sm:$0xff]
    %v1528 = vld [vmem:[#allocation9 + $0xa0] sm:$0xff]
    %v1529 = vld [vmem:[#allocation9 + $0xa8] sm:$0xff]
    %v1530 = vld [vmem:[#allocation9 + $0xb0] sm:$0xff]
    %v1531 = vld [vmem:[#allocation9 + $0xb8] sm:$0xff]
    %v1532 = vld [vmem:[#allocation9 + $0xc0] sm:$0xff]
    %v1533 = vld [vmem:[#allocation9 + $0xc8] sm:$0xff]
    %v1534 = vld [vmem:[#allocation9 + $0xd0] sm:$0xff]
    %v1535 = vld [vmem:[#allocation9 + $0xd8] sm:$0xff]
    %v1536 = vld [vmem:[#allocation9 + $0xe0] sm:$0xff]
    %v1537 = vld [vmem:[#allocation9 + $0xe8] sm:$0xff]
    %v1538 = vld [vmem:[#allocation9 + $0xf0] sm:$0xff]
    %v1539 = vld [vmem:[#allocation9 + $0xf8] sm:$0xff]
    %v1540 = vld [vmem:[#allocation9 + $0x100] sm:$0xff]
    %v1541 = vld [vmem:[#allocation9 + $0x108] sm:$0xff]
    %v1542 = vld [vmem:[#allocation9 + $0x110] sm:$0xff]
    %v1543 = vld [vmem:[#allocation9 + $0x118] sm:$0xff]
    %v1544 = vld [vmem:[#allocation9 + $0x120] sm:$0xff]
    %v1545 = vld [vmem:[#allocation9 + $0x128] sm:$0xff]
    %v1546 = vld [vmem:[#allocation9 + $0x130] sm:$0xff]
    %v1547 = vld [vmem:[#allocation9 + $0x138] sm:$0xff]
    %v1548 = vld [vmem:[#allocation9 + $0x140] sm:$0xff]
    %v1549 = vld [vmem:[#allocation9 + $0x148] sm:$0xff]
    %v1550 = vld [vmem:[#allocation9 + $0x150] sm:$0xff]
    %v1551 = vld [vmem:[#allocation9 + $0x158] sm:$0xff]
    %v1552 = vld [vmem:[#allocation9 + $0x160] sm:$0xff]
    %v1553 = vld [vmem:[#allocation9 + $0x168] sm:$0xff]
    %v1554 = vld [vmem:[#allocation9 + $0x170] sm:$0xff]
    %v1555 = vld [vmem:[#allocation9 + $0x178] sm:$0xff]
    %v1556 = vld [vmem:[%s11] sm:$0x1]
    %v1558 = vlaneseq
    %v1559 = vshrl.u32 %v1558, 7
    %v1560 = vsub.s32 0, %v1559
    %v1561 = vrot.slane %v1556, %v1560
    %1563 = vmatprep.subr.mxu0 0.0
    %1564 = vmatpush1.msra.mxu0 %v1523
    %1565 = vmatprep.subr.mxu0 0.0
    %1566 = vmatpush1.msra.mxu0 %v1522
    %1567 = vmatprep.subr.mxu0 0.0
    %1568 = vmatpush1.msra.mxu0 %v1521
    %1569 = vmatprep.subr.mxu0 0.0
    %1570 = vmatpush1.msra.mxu0 %v1520
    %1571 = vmatprep.subr.mxu0 0.0
    %1572 = vmatpush1.msra.mxu0 %v1519
    %1573 = vmatprep.subr.mxu0 0.0
    %1574 = vmatpush1.msra.mxu0 %v1518
    %1575 = vmatprep.subr.mxu0 0.0
    %1576 = vmatpush1.msra.mxu0 %v1517
    %1577 = vmatprep.subr.mxu0 0.0
    %1578 = vmatpush1.msra.mxu0 %v1516
    %1579 = vmatprep.subr.mxu0 0.0
    %1580 = vmatpush1.msra.mxu0 %v1515
    %1581 = vmatprep.subr.mxu0 0.0
    %1582 = vmatpush1.msra.mxu0 %v1514
    %1583 = vmatprep.subr.mxu0 0.0
    %1584 = vmatpush1.msra.mxu0 %v1513
    %1585 = vmatprep.subr.mxu0 0.0
    %1586 = vmatpush1.msra.mxu0 %v1512
    %1587 = vmatprep.subr.mxu0 0.0
    %1588 = vmatpush1.msra.mxu0 %v1511
    %1589 = vmatprep.subr.mxu0 0.0
    %1590 = vmatpush1.msra.mxu0 %v1510
    %1591 = vmatprep.subr.mxu0 0.0
    %1592 = vmatpush1.msra.mxu0 %v1509
    %1593 = vmatprep.subr.mxu0 0.0
    %1594 = vmatpush1.msra.mxu0 %v1508
    %1595 = vmatprep.subr.mxu0 0.0
    %1596 = vmatpush2.msra.mxu0 %v1539
    %1597 = vmatprep.subr.mxu0 0.0
    %1598 = vmatpush2.msra.mxu0 %v1538
    %1599 = vmatprep.subr.mxu0 0.0
    %1600 = vmatpush2.msra.mxu0 %v1537
    %1601 = vmatprep.subr.mxu0 0.0
    %1602 = vmatpush2.msra.mxu0 %v1536
    %1603 = vmatprep.subr.mxu0 0.0
    %1604 = vmatpush2.msra.mxu0 %v1535
    %1605 = vmatprep.subr.mxu0 0.0
    %1606 = vmatpush2.msra.mxu0 %v1534
    %1607 = vmatprep.subr.mxu0 0.0
    %1608 = vmatpush2.msra.mxu0 %v1533
    %1609 = vmatprep.subr.mxu0 0.0
    %1610 = vmatpush2.msra.mxu0 %v1532
    %1611 = vmatprep.subr.mxu0 0.0
    %1612 = vmatpush2.msra.mxu0 %v1531
    %1613 = vmatprep.subr.mxu0 0.0
    %1614 = vmatpush2.msra.mxu0 %v1530
    %1615 = vmatprep.subr.mxu0 0.0
    %1616 = vmatpush2.msra.mxu0 %v1529
    %1617 = vmatprep.subr.mxu0 0.0
    %1618 = vmatpush2.msra.mxu0 %v1528
    %1619 = vmatprep.subr.mxu0 0.0
    %1620 = vmatpush2.msra.mxu0 %v1527
    %1621 = vmatprep.subr.mxu0 0.0
    %1622 = vmatpush2.msra.mxu0 %v1526
    %1623 = vmatprep.subr.mxu0 0.0
    %1624 = vmatpush2.msra.mxu0 %v1525
    %1625 = vmatprep.subr.mxu0 0.0
    %1626 = vmatpush2.msra.mxu0 %v1524
    %1627 = vmatprep.mubr.f32.mxu0 %v1505
    %1628 = vmatmul.mubr.f32.gmra.mxu0 %v1503
    %v1629 = vpop.f32.mrf.mxu0
    %v1630 = vadd.f32 %v1561, %v1629
    %v1631 = vpop.f32.mrf.mxu0
    %1632 = vdwg.mxu0
    %1633 = vmatprep.subr.mxu0 0.0
    %1634 = vmatpush1.msra.mxu0 %v1555
    %1635 = vmatprep.subr.mxu0 0.0
    %1636 = vmatpush1.msra.mxu0 %v1554
    %1637 = vmatprep.subr.mxu0 0.0
    %1638 = vmatpush1.msra.mxu0 %v1553
    %1639 = vmatprep.subr.mxu0 0.0
    %1640 = vmatpush1.msra.mxu0 %v1552
    %1641 = vmatprep.subr.mxu0 0.0
    %1642 = vmatpush1.msra.mxu0 %v1551
    %1643 = vmatprep.subr.mxu0 0.0
    %1644 = vmatpush1.msra.mxu0 %v1550
    %1645 = vmatprep.subr.mxu0 0.0
    %1646 = vmatpush1.msra.mxu0 %v1549
    %1647 = vmatprep.subr.mxu0 0.0
    %1648 = vmatpush1.msra.mxu0 %v1548
    %1649 = vmatprep.subr.mxu0 0.0
    %1650 = vmatpush1.msra.mxu0 %v1547
    %1651 = vmatprep.subr.mxu0 0.0
    %1652 = vmatpush1.msra.mxu0 %v1546
    %1653 = vmatprep.subr.mxu0 0.0
    %1654 = vmatpush1.msra.mxu0 %v1545
    %1655 = vmatprep.subr.mxu0 0.0
    %1656 = vmatpush1.msra.mxu0 %v1544
    %1657 = vmatprep.subr.mxu0 0.0
    %1658 = vmatpush1.msra.mxu0 %v1543
    %1659 = vmatprep.subr.mxu0 0.0
    %1660 = vmatpush1.msra.mxu0 %v1542
    %1661 = vmatprep.subr.mxu0 0.0
    %1662 = vmatpush1.msra.mxu0 %v1541
    %1663 = vmatprep.subr.mxu0 0.0
    %1664 = vmatpush1.msra.mxu0 %v1540
    %1665 = vmatprep.subr.mxu0 0.0
    %1666 = vmatpush2.msra.mxu0 0.0
    %1667 = vmatprep.subr.mxu0 0.0
    %1668 = vmatpush2.msra.mxu0 0.0
    %1669 = vmatprep.subr.mxu0 0.0
    %1670 = vmatpush2.msra.mxu0 0.0
    %1671 = vmatprep.subr.mxu0 0.0
    %1672 = vmatpush2.msra.mxu0 0.0
    %1673 = vmatprep.subr.mxu0 0.0
    %1674 = vmatpush2.msra.mxu0 0.0
    %1675 = vmatprep.subr.mxu0 0.0
    %1676 = vmatpush2.msra.mxu0 0.0
    %1677 = vmatprep.subr.mxu0 0.0
    %1678 = vmatpush2.msra.mxu0 0.0
    %1679 = vmatprep.subr.mxu0 0.0
    %1680 = vmatpush2.msra.mxu0 0.0
    %1681 = vmatprep.subr.mxu0 0.0
    %1682 = vmatpush2.msra.mxu0 0.0
    %1683 = vmatprep.subr.mxu0 0.0
    %1684 = vmatpush2.msra.mxu0 0.0
    %1685 = vmatprep.subr.mxu0 0.0
    %1686 = vmatpush2.msra.mxu0 0.0
    %1687 = vmatprep.subr.mxu0 0.0
    %1688 = vmatpush2.msra.mxu0 0.0
    %1689 = vmatprep.subr.mxu0 0.0
    %1690 = vmatpush2.msra.mxu0 0.0
    %1691 = vmatprep.subr.mxu0 0.0
    %1692 = vmatpush2.msra.mxu0 0.0
    %1693 = vmatprep.subr.mxu0 0.0
    %1694 = vmatpush2.msra.mxu0 0.0
    %1695 = vmatprep.subr.mxu0 0.0
    %1696 = vmatpush2.msra.mxu0 0.0
    %1697 = vmatprep.mubr.f32.mxu0 0.0
    %1698 = vmatmul.mubr.f32.gmra.mxu0 %v1507
    %v1699 = vpop.f32.mrf.mxu0
    %v1700 = vadd.f32 %v1630, %v1699
    %v1701 = vpop.f32.mrf.mxu0
    %1702 = vdwg.mxu0
    %1703 = vst [vmem:[%s12] sm:$0x7] %v1700
    %s1704 = scalar_lea.vmem [#allocation4], 8
    %v1705 = vld [vmem:[%s1704] ss:$2 sm:$0x7]
    %s1706 = scalar_lea.vmem [#allocation4], 9
    %v1707 = vld [vmem:[%s1706] ss:$2 sm:$0x7]
    %s1708 = scalar_lea.vmem [#allocation4], 10
    %v1709 = vld [vmem:[%s1708] ss:$2 sm:$0x7]
    %v1710 = vld [vmem:[#allocation9] sm:$0xff]
    %v1711 = vld [vmem:[#allocation9 + $0x8] sm:$0xff]
    %v1712 = vld [vmem:[#allocation9 + $0x10] sm:$0xff]
    %v1713 = vld [vmem:[#allocation9 + $0x18] sm:$0xff]
    %v1714 = vld [vmem:[#allocation9 + $0x20] sm:$0xff]
    %v1715 = vld [vmem:[#allocation9 + $0x28] sm:$0xff]
    %v1716 = vld [vmem:[#allocation9 + $0x30] sm:$0xff]
    %v1717 = vld [vmem:[#allocation9 + $0x38] sm:$0xff]
    %v1718 = vld [vmem:[#allocation9 + $0x40] sm:$0xff]
    %v1719 = vld [vmem:[#allocation9 + $0x48] sm:$0xff]
    %v1720 = vld [vmem:[#allocation9 + $0x50] sm:$0xff]
    %v1721 = vld [vmem:[#allocation9 + $0x58] sm:$0xff]
    %v1722 = vld [vmem:[#allocation9 + $0x60] sm:$0xff]
    %v1723 = vld [vmem:[#allocation9 + $0x68] sm:$0xff]
    %v1724 = vld [vmem:[#allocation9 + $0x70] sm:$0xff]
    %v1725 = vld [vmem:[#allocation9 + $0x78] sm:$0xff]
    %v1726 = vld [vmem:[#allocation9 + $0x80] sm:$0xff]
    %v1727 = vld [vmem:[#allocation9 + $0x88] sm:$0xff]
    %v1728 = vld [vmem:[#allocation9 + $0x90] sm:$0xff]
    %v1729 = vld [vmem:[#allocation9 + $0x98] sm:$0xff]
    %v1730 = vld [vmem:[#allocation9 + $0xa0] sm:$0xff]
    %v1731 = vld [vmem:[#allocation9 + $0xa8] sm:$0xff]
    %v1732 = vld [vmem:[#allocation9 + $0xb0] sm:$0xff]
    %v1733 = vld [vmem:[#allocation9 + $0xb8] sm:$0xff]
    %v1734 = vld [vmem:[#allocation9 + $0xc0] sm:$0xff]
    %v1735 = vld [vmem:[#allocation9 + $0xc8] sm:$0xff]
    %v1736 = vld [vmem:[#allocation9 + $0xd0] sm:$0xff]
    %v1737 = vld [vmem:[#allocation9 + $0xd8] sm:$0xff]
    %v1738 = vld [vmem:[#allocation9 + $0xe0] sm:$0xff]
    %v1739 = vld [vmem:[#allocation9 + $0xe8] sm:$0xff]
    %v1740 = vld [vmem:[#allocation9 + $0xf0] sm:$0xff]
    %v1741 = vld [vmem:[#allocation9 + $0xf8] sm:$0xff]
    %v1742 = vld [vmem:[#allocation9 + $0x100] sm:$0xff]
    %v1743 = vld [vmem:[#allocation9 + $0x108] sm:$0xff]
    %v1744 = vld [vmem:[#allocation9 + $0x110] sm:$0xff]
    %v1745 = vld [vmem:[#allocation9 + $0x118] sm:$0xff]
    %v1746 = vld [vmem:[#allocation9 + $0x120] sm:$0xff]
    %v1747 = vld [vmem:[#allocation9 + $0x128] sm:$0xff]
    %v1748 = vld [vmem:[#allocation9 + $0x130] sm:$0xff]
    %v1749 = vld [vmem:[#allocation9 + $0x138] sm:$0xff]
    %v1750 = vld [vmem:[#allocation9 + $0x140] sm:$0xff]
    %v1751 = vld [vmem:[#allocation9 + $0x148] sm:$0xff]
    %v1752 = vld [vmem:[#allocation9 + $0x150] sm:$0xff]
    %v1753 = vld [vmem:[#allocation9 + $0x158] sm:$0xff]
    %v1754 = vld [vmem:[#allocation9 + $0x160] sm:$0xff]
    %v1755 = vld [vmem:[#allocation9 + $0x168] sm:$0xff]
    %v1756 = vld [vmem:[#allocation9 + $0x170] sm:$0xff]
    %v1757 = vld [vmem:[#allocation9 + $0x178] sm:$0xff]
    %v1758 = vld [vmem:[%s11] sm:$0x1]
    %v1760 = vlaneseq
    %v1761 = vshrl.u32 %v1760, 7
    %v1762 = vsub.s32 0, %v1761
    %v1763 = vrot.slane %v1758, %v1762
    %1765 = vmatprep.subr.mxu0 0.0
    %1766 = vmatpush1.msra.mxu0 %v1725
    %1767 = vmatprep.subr.mxu0 0.0
    %1768 = vmatpush1.msra.mxu0 %v1724
    %1769 = vmatprep.subr.mxu0 0.0
    %1770 = vmatpush1.msra.mxu0 %v1723
    %1771 = vmatprep.subr.mxu0 0.0
    %1772 = vmatpush1.msra.mxu0 %v1722
    %1773 = vmatprep.subr.mxu0 0.0
    %1774 = vmatpush1.msra.mxu0 %v1721
    %1775 = vmatprep.subr.mxu0 0.0
    %1776 = vmatpush1.msra.mxu0 %v1720
    %1777 = vmatprep.subr.mxu0 0.0
    %1778 = vmatpush1.msra.mxu0 %v1719
    %1779 = vmatprep.subr.mxu0 0.0
    %1780 = vmatpush1.msra.mxu0 %v1718
    %1781 = vmatprep.subr.mxu0 0.0
    %1782 = vmatpush1.msra.mxu0 %v1717
    %1783 = vmatprep.subr.mxu0 0.0
    %1784 = vmatpush1.msra.mxu0 %v1716
    %1785 = vmatprep.subr.mxu0 0.0
    %1786 = vmatpush1.msra.mxu0 %v1715
    %1787 = vmatprep.subr.mxu0 0.0
    %1788 = vmatpush1.msra.mxu0 %v1714
    %1789 = vmatprep.subr.mxu0 0.0
    %1790 = vmatpush1.msra.mxu0 %v1713
    %1791 = vmatprep.subr.mxu0 0.0
    %1792 = vmatpush1.msra.mxu0 %v1712
    %1793 = vmatprep.subr.mxu0 0.0
    %1794 = vmatpush1.msra.mxu0 %v1711
    %1795 = vmatprep.subr.mxu0 0.0
    %1796 = vmatpush1.msra.mxu0 %v1710
    %1797 = vmatprep.subr.mxu0 0.0
    %1798 = vmatpush2.msra.mxu0 %v1741
    %1799 = vmatprep.subr.mxu0 0.0
    %1800 = vmatpush2.msra.mxu0 %v1740
    %1801 = vmatprep.subr.mxu0 0.0
    %1802 = vmatpush2.msra.mxu0 %v1739
    %1803 = vmatprep.subr.mxu0 0.0
    %1804 = vmatpush2.msra.mxu0 %v1738
    %1805 = vmatprep.subr.mxu0 0.0
    %1806 = vmatpush2.msra.mxu0 %v1737
    %1807 = vmatprep.subr.mxu0 0.0
    %1808 = vmatpush2.msra.mxu0 %v1736
    %1809 = vmatprep.subr.mxu0 0.0
    %1810 = vmatpush2.msra.mxu0 %v1735
    %1811 = vmatprep.subr.mxu0 0.0
    %1812 = vmatpush2.msra.mxu0 %v1734
    %1813 = vmatprep.subr.mxu0 0.0
    %1814 = vmatpush2.msra.mxu0 %v1733
    %1815 = vmatprep.subr.mxu0 0.0
    %1816 = vmatpush2.msra.mxu0 %v1732
    %1817 = vmatprep.subr.mxu0 0.0
    %1818 = vmatpush2.msra.mxu0 %v1731
    %1819 = vmatprep.subr.mxu0 0.0
    %1820 = vmatpush2.msra.mxu0 %v1730
    %1821 = vmatprep.subr.mxu0 0.0
    %1822 = vmatpush2.msra.mxu0 %v1729
    %1823 = vmatprep.subr.mxu0 0.0
    %1824 = vmatpush2.msra.mxu0 %v1728
    %1825 = vmatprep.subr.mxu0 0.0
    %1826 = vmatpush2.msra.mxu0 %v1727
    %1827 = vmatprep.subr.mxu0 0.0
    %1828 = vmatpush2.msra.mxu0 %v1726
    %1829 = vmatprep.mubr.f32.mxu0 %v1707
    %1830 = vmatmul.mubr.f32.gmra.mxu0 %v1705
    %v1831 = vpop.f32.mrf.mxu0
    %v1832 = vadd.f32 %v1763, %v1831
    %v1833 = vpop.f32.mrf.mxu0
    %1834 = vdwg.mxu0
    %1835 = vmatprep.subr.mxu0 0.0
    %1836 = vmatpush1.msra.mxu0 %v1757
    %1837 = vmatprep.subr.mxu0 0.0
    %1838 = vmatpush1.msra.mxu0 %v1756
    %1839 = vmatprep.subr.mxu0 0.0
    %1840 = vmatpush1.msra.mxu0 %v1755
    %1841 = vmatprep.subr.mxu0 0.0
    %1842 = vmatpush1.msra.mxu0 %v1754
    %1843 = vmatprep.subr.mxu0 0.0
    %1844 = vmatpush1.msra.mxu0 %v1753
    %1845 = vmatprep.subr.mxu0 0.0
    %1846 = vmatpush1.msra.mxu0 %v1752
    %1847 = vmatprep.subr.mxu0 0.0
    %1848 = vmatpush1.msra.mxu0 %v1751
    %1849 = vmatprep.subr.mxu0 0.0
    %1850 = vmatpush1.msra.mxu0 %v1750
    %1851 = vmatprep.subr.mxu0 0.0
    %1852 = vmatpush1.msra.mxu0 %v1749
    %1853 = vmatprep.subr.mxu0 0.0
    %1854 = vmatpush1.msra.mxu0 %v1748
    %1855 = vmatprep.subr.mxu0 0.0
    %1856 = vmatpush1.msra.mxu0 %v1747
    %1857 = vmatprep.subr.mxu0 0.0
    %1858 = vmatpush1.msra.mxu0 %v1746
    %1859 = vmatprep.subr.mxu0 0.0
    %1860 = vmatpush1.msra.mxu0 %v1745
    %1861 = vmatprep.subr.mxu0 0.0
    %1862 = vmatpush1.msra.mxu0 %v1744
    %1863 = vmatprep.subr.mxu0 0.0
    %1864 = vmatpush1.msra.mxu0 %v1743
    %1865 = vmatprep.subr.mxu0 0.0
    %1866 = vmatpush1.msra.mxu0 %v1742
    %1867 = vmatprep.subr.mxu0 0.0
    %1868 = vmatpush2.msra.mxu0 0.0
    %1869 = vmatprep.subr.mxu0 0.0
    %1870 = vmatpush2.msra.mxu0 0.0
    %1871 = vmatprep.subr.mxu0 0.0
    %1872 = vmatpush2.msra.mxu0 0.0
    %1873 = vmatprep.subr.mxu0 0.0
    %1874 = vmatpush2.msra.mxu0 0.0
    %1875 = vmatprep.subr.mxu0 0.0
    %1876 = vmatpush2.msra.mxu0 0.0
    %1877 = vmatprep.subr.mxu0 0.0
    %1878 = vmatpush2.msra.mxu0 0.0
    %1879 = vmatprep.subr.mxu0 0.0
    %1880 = vmatpush2.msra.mxu0 0.0
    %1881 = vmatprep.subr.mxu0 0.0
    %1882 = vmatpush2.msra.mxu0 0.0
    %1883 = vmatprep.subr.mxu0 0.0
    %1884 = vmatpush2.msra.mxu0 0.0
    %1885 = vmatprep.subr.mxu0 0.0
    %1886 = vmatpush2.msra.mxu0 0.0
    %1887 = vmatprep.subr.mxu0 0.0
    %1888 = vmatpush2.msra.mxu0 0.0
    %1889 = vmatprep.subr.mxu0 0.0
    %1890 = vmatpush2.msra.mxu0 0.0
    %1891 = vmatprep.subr.mxu0 0.0
    %1892 = vmatpush2.msra.mxu0 0.0
    %1893 = vmatprep.subr.mxu0 0.0
    %1894 = vmatpush2.msra.mxu0 0.0
    %1895 = vmatprep.subr.mxu0 0.0
    %1896 = vmatpush2.msra.mxu0 0.0
    %1897 = vmatprep.subr.mxu0 0.0
    %1898 = vmatpush2.msra.mxu0 0.0
    %1899 = vmatprep.mubr.f32.mxu0 0.0
    %1900 = vmatmul.mubr.f32.gmra.mxu0 %v1709
    %v1901 = vpop.f32.mrf.mxu0
    %v1902 = vadd.f32 %v1832, %v1901
    %v1903 = vpop.f32.mrf.mxu0
    %1904 = vdwg.mxu0
    %s1905 = scalar_lea.vmem %s12, 4
    %1906 = vst [vmem:[%s1905] sm:$0x7] %v1902
    // Predicated region
    $region62: #{classifier_forward.1} parent=1 // pred_check
      _
    $region63: #{classifier_forward.1} parent=1 // pred_check_branch
      %1908 = sbr.rel (0) target = $region65
    $region64: #{classifier_forward.1} parent=1 // pred_region
      _
    $region65: #{classifier_forward.1} parent=1 // pred_fallthru
      _
    // Predicated region
    $region66: #{classifier_forward.1} parent=1 // pred_check
      _
    $region67: #{classifier_forward.1} parent=1 // pred_check_branch
      %1910 = sbr.rel (0) target = $region69
    $region68: #{classifier_forward.1} parent=1 // pred_region
      _
    $region69: #{classifier_forward.1} parent=1 // pred_fallthru
      _
    %1911 = vsyncpa [#allocation6], 1
    %1912 = vsyncpa [#allocation8], 1

</llo_original>
